<compile_context>
chip_gen: v7x
topology: tpu7x:2x2x1
jax: 0.10.0
libtpu: 0.0.40
codegen_flags: <defaults>
</compile_context>

<pallas_src>
import functools
import types

import jax
import jax.numpy as jnp
from jax.experimental import pallas as pl
from jax.experimental.pallas import tpu as pltpu

C_IN = 3          # RGB
C_FEAT = 32       # feature / text-embedding dim
KSIZE = 3         # conv stem kernel size
MAX_TILE = 4096   # spatial positions per grid step for large images (~8 MiB VMEM/step)


# ----------------------------------------------------------------------------
# Fused Pallas kernel: in-VMEM im2col + conv stem + contrastive/box head
# ----------------------------------------------------------------------------
def _fused_yolo_kernel(bias_ref, img_hbm, ws_ref, bs_ref, wc_ref, mask_ref,
                       out_ref, slab_ref, sem,
                       *, tile, slab_rows, tap_offsets):
    """One tile of flattened (zero-padded) spatial positions.

    bias_ref : SMEM (1,) f32                      contrastive logit bias
    img_hbm  : ANY  (nq_pad + 2*halo, 3) f32      padded image, flat positions
    ws_ref   : VMEM (27, C_FEAT) bf16             conv-stem weight (im2col layout)
    bs_ref   : VMEM (1, C_FEAT) f32               conv-stem bias
    wc_ref   : VMEM (C_FEAT, head_out) bf16       [scale * L2-normed text | box W | 0]
    mask_ref : VMEM (1, head_out) f32             1.0 on class columns, else 0.0
    out_ref  : VMEM (tile, head_out) bf16         [:T]=sigmoid scores, [T:T+4]=box reg
    slab_ref : VMEM (tile + 2*halo, 3) f32        manual-DMA image row slab
    sem      : DMA semaphore
    """
    i = pl.program_id(0)
    row0 = pl.multiple_of(i * tile, 8)

    # Self-contained per-step DMA of the halo'd row slab (megacore-parallel safe).
    cp = pltpu.make_async_copy(img_hbm.at[pl.ds(row0, slab_rows), :], slab_ref, sem)
    cp.start()
    cp.wait()

    # --- in-VMEM im2col: 9 shifted static slices -> (tile, 27) patch matrix ---
    taps = [slab_ref[pl.ds(off, tile), :] for off in tap_offsets]   # 9 x (tile, 3) f32
    patch = jnp.concatenate(taps, axis=-1).astype(jnp.bfloat16)     # (tile, 27) bf16

    # --- conv stem: bf16 MXU operands, f32 accumulation, f32 SiLU epilogue ----
    acc = jnp.dot(patch, ws_ref[...], preferred_element_type=jnp.float32)
    acc = acc + bs_ref[...]
    feat = acc * jax.nn.sigmoid(acc)                                # SiLU, (tile, 32) f32

    # features as consumed by the head matmul (bf16-rounded) -> consistent norm
    fb = feat.astype(jnp.bfloat16)
    fc = fb.astype(jnp.float32)
    ssq = jnp.sum(fc * fc, axis=-1, keepdims=True)                  # (tile, 1)
    inv_norm = jax.lax.rsqrt(jnp.maximum(ssq, 1e-24))               # == 1/max(||f||, 1e-12)

    # --- single head matmul: [scaled text cols | box cols | zero pad] ---------
    head = jnp.dot(fb, wc_ref[...], preferred_element_type=jnp.float32)  # (tile, head_out)

    # class cols: sigmoid(scale*(f_hat . t_hat) + bias); box/pad cols: raw head.
    cls = jax.nn.sigmoid(head * inv_norm + bias_ref[0])
    m = mask_ref[...]                                               # (1, head_out)
    out = head + m * (cls - head)                                   # arithmetic blend
    out_ref[...] = out.astype(out_ref.dtype)


def fused_detector_forward(img_hwc_f32, w_stem, b_stem, w_comb, cls_mask, logit_bias):
    """Pad + flatten the image and run the fused kernel over all positions.

    Returns (out, nq): out is (nq_pad, head_out) bf16 over *padded* positions
    (row-major over the (H+2, W+2) zero-padded image); nq = (H+2)*(W+2).
    """
    H, W, _ = img_hwc_f32.shape
    Hp, Wp = H + 2, W + 2
    halo = Wp + 1                     # = W + 3: max |flat-index shift| of a 3x3 tap
    nq = Hp * Wp

    # Tile selection: >= 2 grid steps so both v7x TensorCores get work; tile
    # derived from cdiv(nq, steps) so last-tile padding waste is bounded
    # (< 16 rows/step); capped at MAX_TILE to stay ~8 MiB VMEM per step.
    steps = max(2, pl.cdiv(nq, MAX_TILE))
    tile = max(16, ((pl.cdiv(nq, steps) + 15) // 16) * 16)
    nq_pad = steps * tile
    slab_rows = tile + 2 * halo

    # Host prep is only a zero-pad + reshape of the raw image (no im2col, no
    # 9x duplication).  The f32 slab keeps the shifted tap slices on the plain
    # unpacked sublane-shift path.
    # TODO(synk): at real YOLO resolutions the remaining pad round-trip could be
    # removed by masking boundary taps in-kernel, and the slab could be bf16.
    img_pad = jnp.pad(img_hwc_f32, ((1, 1), (1, 1), (0, 0)))
    x_flat = img_pad.reshape(nq, C_IN)
    x_store = jnp.pad(x_flat, ((halo, halo + (nq_pad - nq)), (0, 0)))  # f32

    # tap k = (dy, dx): slab-row offset of its window start for this tile.
    tap_offsets = tuple(halo + (dy - 1) * Wp + (dx - 1)
                        for dy in range(KSIZE) for dx in range(KSIZE))

    head_out = w_comb.shape[1]
    bias_smem = jnp.array([logit_bias], jnp.float32)

    kernel = functools.partial(_fused_yolo_kernel, tile=tile,
                               slab_rows=slab_rows, tap_offsets=tap_offsets)

    cost = pl.CostEstimate(
        flops=int(2 * nq_pad * C_FEAT * (KSIZE * KSIZE * C_IN + head_out)),
        transcendentals=int(nq_pad * (C_FEAT + head_out + 1)),
        bytes_accessed=int(x_store.size * 4 + nq_pad * head_out * 2
                           + w_stem.size * 2 + w_comb.size * 2),
    )

    out = pl.pallas_call(
        kernel,
        out_shape=jax.ShapeDtypeStruct((nq_pad, head_out), jnp.bfloat16),
        grid_spec=pltpu.PrefetchScalarGridSpec(
            num_scalar_prefetch=0,
            grid=(steps,),
            in_specs=[
                pl.BlockSpec(memory_space=pltpu.MemorySpace.SMEM),        # logit bias
                pl.BlockSpec(memory_space=pl.ANY),                        # padded image (HBM)
                pl.BlockSpec((KSIZE * KSIZE * C_IN, C_FEAT), lambda i: (0, 0)),
                pl.BlockSpec((1, C_FEAT), lambda i: (0, 0)),
                pl.BlockSpec((C_FEAT, head_out), lambda i: (0, 0)),
                pl.BlockSpec((1, head_out), lambda i: (0, 0)),
            ],
            out_specs=pl.BlockSpec((tile, head_out), lambda i: (i, 0)),
            scratch_shapes=[
                pltpu.VMEM((slab_rows, C_IN), jnp.float32),               # row slab
                pltpu.SemaphoreType.DMA(()),
            ],
        ),
        compiler_params=pltpu.CompilerParams(
            dimension_semantics=("parallel",),      # megacore-safe: steps are independent
            vmem_limit_bytes=32 * 1024 * 1024,
        ),
        cost_estimate=cost,
    )(bias_smem, x_store, w_stem, b_stem, w_comb, cls_mask)
    return out, nq


# ----------------------------------------------------------------------------
# Glue (plain JAX): text "encoder", head-weight packing, box decoding
# ----------------------------------------------------------------------------
class YoloWorldDetectorPallas:
    """Synthetic-weight, Pallas-backed stand-in for YoloWorld_Detector."""

    def __init__(self, key=jax.random.PRNGKey(0)):
        k1, k2, k3 = jax.random.split(key, 3)
        # conv stem weights (im2col layout: (k*k*Cin, Cout)), bf16 MXU operand
        self.w_stem = (0.1 * jax.random.normal(
            k1, (KSIZE * KSIZE * C_IN, C_FEAT), jnp.float32)).astype(jnp.bfloat16)
        self.b_stem = 0.01 * jax.random.normal(k2, (1, C_FEAT), jnp.float32)
        # box regression head (1x1 conv == matmul)
        self.w_box = 0.1 * jax.random.normal(k3, (C_FEAT, 4), jnp.float32)
        # CLIP-like logit scale + YOLO-World contrastive bias
        self.logit_scale = 1.0 / 0.07
        self.logit_bias = -10.0

    def encode_text(self, texts):
        # TODO(synk): real model uses a frozen CLIP text encoder; here each text
        # is mapped to a deterministic pseudo-embedding seeded by its characters.
        embeds = []
        for t in texts:
            seed = sum(ord(c) for c in t) % (2 ** 31 - 1)
            embeds.append(jax.random.normal(jax.random.PRNGKey(seed), (C_FEAT,), jnp.float32))
        return jnp.stack(embeds, axis=0)  # (T, C_FEAT)

    def _build_head_weights(self, txt):
        # Hoisted (loop-invariant) text L2 normalization + logit-scale fold, f32.
        T = txt.shape[0]
        head_out = max(8, ((T + 4 + 7) // 8) * 8)
        nrm = jnp.sqrt(jnp.sum(txt * txt, axis=-1, keepdims=True))
        tn = txt / jnp.maximum(nrm, 1e-12)
        w = jnp.concatenate([self.logit_scale * tn.T, self.w_box], axis=1)  # (32, T+4) f32
        w = jnp.pad(w, ((0, 0), (0, head_out - (T + 4))))
        mask = (jnp.arange(head_out) < T).astype(jnp.float32)[None, :]      # class columns
        return w.astype(jnp.bfloat16), mask, head_out

    def run_image(self, img_array_hwc, texts):
        H, W, _ = img_array_hwc.shape
        txt = self.encode_text(texts[0])                       # (T, C_FEAT)
        T = txt.shape[0]
        w_comb, cls_mask, head_out = self._build_head_weights(txt)

        out_pad, nq = fused_detector_forward(
            img_array_hwc.astype(jnp.float32), self.w_stem, self.b_stem,
            w_comb, cls_mask, self.logit_bias)                 # (nq_pad, head_out) bf16

        # Drop the zero-padding positions (rows/cols added for the 3x3 halo).
        Hp, Wp = H + 2, W + 2
        out = out_pad[:nq].astype(jnp.float32).reshape(Hp, Wp, head_out)
        out = out[1:H + 1, 1:W + 1].reshape(H * W, head_out)
        # NOTE: bf16 MXU operands + bf16 output => validate vs an f32 reference
        # with a tolerance test, not exact match.
        scores = out[:, :T]                                    # (H*W, T)
        reg = out[:, T:T + 4]                                  # (H*W, 4)

        # anchor-based decode (glue): grid-cell centers + predicted offsets/sizes
        ys, xs = jnp.meshgrid(jnp.arange(H, dtype=jnp.float32) + 0.5,
                              jnp.arange(W, dtype=jnp.float32) + 0.5, indexing="ij")
        anchors = jnp.stack([xs.reshape(-1), ys.reshape(-1)], axis=-1)  # (H*W, 2)
        ctr = anchors + reg[:, :2]
        wh = jax.nn.softplus(reg[:, 2:])
        boxes = jnp.concatenate([ctr - 0.5 * wh, ctr + 0.5 * wh], axis=-1)  # xyxy

        labels = jnp.argmax(scores, axis=-1)
        # TODO(synk): NMS / score thresholding of the real detector is omitted.
        return {"boxes": boxes, "scores": scores, "labels": labels}

    def forward(self, data_tuple):
        samples, event_samples, targets = data_tuple
        caption = targets[0]["caption"]
        image = samples.tensors[0]                      # (C, H, W), values in [0, 1]
        image_hwc = jnp.transpose(image, (1, 2, 0))     # permute(1, 2, 0)
        # Original wrapper does image*255 and the model immediately divides by
        # 255; the round-trip is a no-op, so pass the [0,1] HWC image directly.
        pred_rel = self.run_image(img_array_hwc=image_hwc,
                                  texts=[[caption] + [" "]])
        return pred_rel

    __call__ = forward


# ----------------------------------------------------------------------------
# main
# ----------------------------------------------------------------------------
if __name__ == "__main__":
    key = jax.random.PRNGKey(0)
    k_img, k_params = jax.random.split(key)

    H, W = 16, 16
    img_chw = jax.random.uniform(k_img, (C_IN, H, W), jnp.float32)  # (3, 16, 16)

    samples = types.SimpleNamespace(tensors=[img_chw])
    event_samples = None
    targets = [{"caption": "a person riding a bicycle"}]

    detector = YoloWorldDetectorPallas(k_params)
    pred = detector((samples, event_samples, targets))

    jax.block_until_ready(pred["boxes"])
    jax.block_until_ready(pred["scores"])

    assert pred["boxes"].shape == (H * W, 4)
    assert pred["scores"].shape == (H * W, 2)
    assert pred["labels"].shape == (H * W,)
    print("KERNEL_OK")
</pallas_src>

<mosaic_0001>
module attributes {stable_mosaic.version = 11 : i64} {
  func.func @_fused_yolo_kernel(%arg0: i32, %arg1: memref<1xf32, #tpu.memory_space<smem>>, %arg2: memref<390x3xf32, #tpu.memory_space<any>>, %arg3: memref<27x32xbf16, #tpu.memory_space<vmem>>, %arg4: memref<1x32xf32, #tpu.memory_space<vmem>>, %arg5: memref<32x8xbf16, #tpu.memory_space<vmem>>, %arg6: memref<1x8xf32, #tpu.memory_space<vmem>>, %arg7: memref<176x8xbf16, #tpu.memory_space<vmem>>, %arg8: memref<214x3xf32, #tpu.memory_space<vmem>>, %arg9: memref<!tpu.dma_semaphore, #tpu.memory_space<semaphore_mem>>) attributes {dimension_semantics = [#tpu.dimension_semantics<parallel>], iteration_bounds = array<i64: 2>, scalar_prefetch = 0 : i64, scratch_operands = 2 : i64, tpu.core_type = #tpu.core_type<tc>, window_params = [{transform_indices = @transform_0, window_bounds = array<i64: 1>}, {}, {pipeline_mode = #tpu.pipeline_mode<synchronous>, transform_indices = @transform_2, window_bounds = array<i64: 27, 32>}, {pipeline_mode = #tpu.pipeline_mode<synchronous>, transform_indices = @transform_3, window_bounds = array<i64: 1, 32>}, {pipeline_mode = #tpu.pipeline_mode<synchronous>, transform_indices = @transform_4, window_bounds = array<i64: 32, 8>}, {pipeline_mode = #tpu.pipeline_mode<synchronous>, transform_indices = @transform_5, window_bounds = array<i64: 1, 8>}, {transform_indices = @transform_6, window_bounds = array<i64: 176, 8>}]} {
    %c176_i32 = arith.constant 176 : i32
    %0 = arith.muli %arg0, %c176_i32 : i32
    %1 = tpu.assume_multiple %0, 8 : i32
    %c0_i32 = arith.constant 0 : i32
    %2 = tpu.memref_slice %arg2[%1, %c0_i32] : memref<390x3xf32, #tpu.memory_space<any>> -> memref<214x3xf32, #tpu.memory_space<any>>
    tpu.enqueue_dma source(%2 : memref<214x3xf32, #tpu.memory_space<any>>) target(%arg8 : memref<214x3xf32, #tpu.memory_space<vmem>>) target_semaphore(%arg9 : memref<!tpu.dma_semaphore, #tpu.memory_space<semaphore_mem>>)
    %c0_i32_0 = arith.constant 0 : i32
    %3 = tpu.memref_slice %arg2[%1, %c0_i32_0] : memref<390x3xf32, #tpu.memory_space<any>> -> memref<214x3xf32, #tpu.memory_space<any>>
    tpu.wait_dma2 semaphore(%arg9 : memref<!tpu.dma_semaphore, #tpu.memory_space<semaphore_mem>>) src(%3 : memref<214x3xf32, #tpu.memory_space<any>>) dst(%arg8 : memref<214x3xf32, #tpu.memory_space<vmem>>)
    %c0 = arith.constant 0 : index
    %c0_1 = arith.constant 0 : index
    %4 = vector.load %arg8[%c0, %c0_1] : memref<214x3xf32, #tpu.memory_space<vmem>>, vector<176x3xf32>
    %c1 = arith.constant 1 : index
    %c0_2 = arith.constant 0 : index
    %5 = vector.load %arg8[%c1, %c0_2] : memref<214x3xf32, #tpu.memory_space<vmem>>, vector<176x3xf32>
    %c2 = arith.constant 2 : index
    %c0_3 = arith.constant 0 : index
    %6 = vector.load %arg8[%c2, %c0_3] : memref<214x3xf32, #tpu.memory_space<vmem>>, vector<176x3xf32>
    %c18 = arith.constant 18 : index
    %c0_4 = arith.constant 0 : index
    %7 = vector.load %arg8[%c18, %c0_4] : memref<214x3xf32, #tpu.memory_space<vmem>>, vector<176x3xf32>
    %c19 = arith.constant 19 : index
    %c0_5 = arith.constant 0 : index
    %8 = vector.load %arg8[%c19, %c0_5] : memref<214x3xf32, #tpu.memory_space<vmem>>, vector<176x3xf32>
    %c20 = arith.constant 20 : index
    %c0_6 = arith.constant 0 : index
    %9 = vector.load %arg8[%c20, %c0_6] : memref<214x3xf32, #tpu.memory_space<vmem>>, vector<176x3xf32>
    %c36 = arith.constant 36 : index
    %c0_7 = arith.constant 0 : index
    %10 = vector.load %arg8[%c36, %c0_7] : memref<214x3xf32, #tpu.memory_space<vmem>>, vector<176x3xf32>
    %c37 = arith.constant 37 : index
    %c0_8 = arith.constant 0 : index
    %11 = vector.load %arg8[%c37, %c0_8] : memref<214x3xf32, #tpu.memory_space<vmem>>, vector<176x3xf32>
    %c38 = arith.constant 38 : index
    %c0_9 = arith.constant 0 : index
    %12 = vector.load %arg8[%c38, %c0_9] : memref<214x3xf32, #tpu.memory_space<vmem>>, vector<176x3xf32>
    %13 = tpu.concatenate %4, %5, %6, %7, %8, %9, %10, %11, %12 in 1 : vector<176x3xf32>, vector<176x3xf32>, vector<176x3xf32>, vector<176x3xf32>, vector<176x3xf32>, vector<176x3xf32>, vector<176x3xf32>, vector<176x3xf32>, vector<176x3xf32> -> vector<176x27xf32>
    %14 = arith.truncf %13 : vector<176x27xf32> to vector<176x27xbf16>
    %c0_10 = arith.constant 0 : index
    %c0_11 = arith.constant 0 : index
    %15 = vector.load %arg3[%c0_10, %c0_11] : memref<27x32xbf16, #tpu.memory_space<vmem>>, vector<27x32xbf16>
    %cst = arith.constant dense<0.000000e+00> : vector<176x32xf32>
    %16 = tpu.matmul %14, %15, %cst {dimension_numbers = #tpu.dot_dimension_numbers<[1], [0], [0], [1], [0, 0, 1, 1], [], []>} : vector<176x27xbf16>, vector<27x32xbf16>, vector<176x32xf32> -> vector<176x32xf32>
    %c0_12 = arith.constant 0 : index
    %c0_13 = arith.constant 0 : index
    %17 = vector.load %arg4[%c0_12, %c0_13] : memref<1x32xf32, #tpu.memory_space<vmem>>, vector<1x32xf32>
    %18 = vector.broadcast %17 : vector<1x32xf32> to vector<176x32xf32>
    %19 = arith.addf %16, %18 : vector<176x32xf32>
    %20 = arith.negf %19 : vector<176x32xf32>
    %21 = math.exp %20 : vector<176x32xf32>
    %cst_14 = arith.constant 1.000000e+00 : f32
    %22 = vector.broadcast %cst_14 : f32 to vector<176x32xf32>
    %23 = arith.addf %22, %21 : vector<176x32xf32>
    %24 = arith.divf %22, %23 : vector<176x32xf32>
    %25 = arith.mulf %19, %24 : vector<176x32xf32>
    %26 = arith.truncf %25 : vector<176x32xf32> to vector<176x32xbf16>
    %27 = arith.extf %26 : vector<176x32xbf16> to vector<176x32xf32>
    %28 = arith.mulf %27, %27 : vector<176x32xf32>
    %cst_15 = arith.constant dense<0.000000e+00> : vector<176xf32>
    %29 = vector.multi_reduction <add>, %28, %cst_15 [1] : vector<176x32xf32> to vector<176xf32>
    %30 = vector.shape_cast %29 : vector<176xf32> to vector<176x1xf32>
    %cst_16 = arith.constant 1.000000e-24 : f32
    %31 = vector.broadcast %cst_16 : f32 to vector<176x1xf32>
    %32 = arith.maximumf %30, %31 : vector<176x1xf32>
    %33 = math.rsqrt %32 : vector<176x1xf32>
    %c0_17 = arith.constant 0 : index
    %c0_18 = arith.constant 0 : index
    %34 = vector.load %arg5[%c0_17, %c0_18] : memref<32x8xbf16, #tpu.memory_space<vmem>>, vector<32x8xbf16>
    %cst_19 = arith.constant dense<0.000000e+00> : vector<176x8xf32>
    %35 = tpu.matmul %26, %34, %cst_19 {dimension_numbers = #tpu.dot_dimension_numbers<[1], [0], [0], [1], [0, 0, 1, 1], [], []>} : vector<176x32xbf16>, vector<32x8xbf16>, vector<176x8xf32> -> vector<176x8xf32>
    %36 = vector.broadcast %33 : vector<176x1xf32> to vector<176x8xf32>
    %37 = arith.mulf %35, %36 : vector<176x8xf32>
    %c0_20 = arith.constant 0 : index
    %38 = memref.load %arg1[%c0_20] : memref<1xf32, #tpu.memory_space<smem>>
    %39 = vector.broadcast %38 : f32 to vector<176x8xf32>
    %40 = arith.addf %37, %39 : vector<176x8xf32>
    %41 = arith.negf %40 : vector<176x8xf32>
    %42 = math.exp %41 : vector<176x8xf32>
    %cst_21 = arith.constant 1.000000e+00 : f32
    %43 = vector.broadcast %cst_21 : f32 to vector<176x8xf32>
    %44 = arith.addf %43, %42 : vector<176x8xf32>
    %45 = arith.divf %43, %44 : vector<176x8xf32>
    %c0_22 = arith.constant 0 : index
    %c0_23 = arith.constant 0 : index
    %46 = vector.load %arg6[%c0_22, %c0_23] : memref<1x8xf32, #tpu.memory_space<vmem>>, vector<1x8xf32>
    %47 = arith.subf %45, %35 : vector<176x8xf32>
    %48 = vector.broadcast %46 : vector<1x8xf32> to vector<176x8xf32>
    %49 = arith.mulf %48, %47 : vector<176x8xf32>
    %50 = arith.addf %35, %49 : vector<176x8xf32>
    %51 = arith.truncf %50 : vector<176x8xf32> to vector<176x8xbf16>
    %c0_24 = arith.constant 0 : index
    %c0_25 = arith.constant 0 : index
    %52 = vector.load %arg7[%c0_24, %c0_25] : memref<176x8xbf16, #tpu.memory_space<vmem>>, vector<176x8xbf16>
    tpu.vector_store %arg7[%c0_24, %c0_25], %51 {strides = array<i32>} : memref<176x8xbf16, #tpu.memory_space<vmem>>, vector<176x8xbf16>,
    return
  }
  func.func @transform_0(%arg0: i32) -> i32 {
    %c0_i32 = arith.constant 0 : i32
    %c0_i32_0 = arith.constant 0 : i32
    return %c0_i32 : i32
  }
  func.func @transform_2(%arg0: i32) -> (i32, i32) {
    %c0_i32 = arith.constant 0 : i32
    %c0_i32_0 = arith.constant 0 : i32
    %c0_i32_1 = arith.constant 0 : i32
    return %c0_i32, %c0_i32_0 : i32, i32
  }
  func.func @transform_3(%arg0: i32) -> (i32, i32) {
    %c0_i32 = arith.constant 0 : i32
    %c0_i32_0 = arith.constant 0 : i32
    %c0_i32_1 = arith.constant 0 : i32
    return %c0_i32, %c0_i32_0 : i32, i32
  }
  func.func @transform_4(%arg0: i32) -> (i32, i32) {
    %c0_i32 = arith.constant 0 : i32
    %c0_i32_0 = arith.constant 0 : i32
    %c0_i32_1 = arith.constant 0 : i32
    return %c0_i32, %c0_i32_0 : i32, i32
  }
  func.func @transform_5(%arg0: i32) -> (i32, i32) {
    %c0_i32 = arith.constant 0 : i32
    %c0_i32_0 = arith.constant 0 : i32
    %c0_i32_1 = arith.constant 0 : i32
    return %c0_i32, %c0_i32_0 : i32, i32
  }
  func.func @transform_6(%arg0: i32) -> (i32, i32) {
    %c0_i32 = arith.constant 0 : i32
    %c0_i32_0 = arith.constant 0 : i32
    return %arg0, %c0_i32 : i32, i32
  }
}

</mosaic_0001>

<llo_original>
// kernel: tpu_custom_call.1
$region0: #{tpu_custom_call.1}
  #allocation0 [shape = 'u32[]', space=smem, size = 0x4, offset = 0x4, fixed_abs, tag = 'smem constant byte address 0x4 - core index']
  #allocation1 [shape = 'u32[144,128]{1,0:T(1,128)}', space=vmem, size = 0x12000, scoped, tag = 'internal scratch']
  #allocation2 [shape = 'f32[214,3]{1,0:T(8,128)}', space=vmem, size = 0x1b000, scoped, tag = 'scratch operand']
  #allocation3 [shape = 's32[1]{0}', space=sflag, size = 0x4, scoped, tag = 'scratch operand']
  #allocation4 [shape = 'f32[1]{0:T(128)S(6)}', space=smem, size = 0x200, scoped, tag = 'scoped memory for tpu_custom_call.1']
  #allocation5 [shape = 's32[]', space=sflag, size = 0x4, offset = 0, fixed_abs, tag = 'sflag constant byte address 0x0 - dummy sync flag']
  %s0 = inlined_call_operand.<no memory space> [shape: f32[1], index: 0, kind: input, shape index: {}]
  %s1 = inlined_call_operand.vmem [shape: f32[390,3], index: 1, kind: input, shape index: {}]
  %s2 = inlined_call_operand.vmem [shape: bf16[27,32], index: 2, kind: input, shape index: {}]
  %s3 = inlined_call_operand.vmem [shape: f32[1,32], index: 3, kind: input, shape index: {}]
  %s4 = inlined_call_operand.vmem [shape: bf16[32,8], index: 4, kind: input, shape index: {}]
  %s5 = inlined_call_operand.vmem [shape: f32[1,8], index: 5, kind: input, shape index: {}]
  %s6 = inlined_call_operand.vmem [shape: bf16[352,8], index: 6, kind: output, shape index: {}]
  %s7 = sld [smem:[#allocation0]]
  $region90: #{tpu_custom_call.1} parent=0
    _
  %s9 = ssub.s32 1, %s7
  %s10 = scalar_select 0, %s9, %s7
  %11 = sst [smem:[#allocation4]] %s0
  loop: start=0, step=1, limit=4
  $region2: #{tpu_custom_call.1} parent=0 // loop_pre_header
    _
  $region3: #{tpu_custom_call.1} parent=0 // loop_header
    %s13 = sphi 0, %s17
    %p14 = scmp.ge.s32.totalorder %s13, 4
    %s21 = sphi 0, %s21
    %s23 = sphi 0, %s21
    %s24 = sphi 0, %s23
    %s38 = sphi 0, %s24
    %s42 = sphi 0, %s42
    %s44 = sphi 0, %s42
    %s45 = sphi 0, %s44
    %s59 = sphi 0, %s45
    %s63 = sphi 0, %s63
    %s65 = sphi 0, %s63
    %s66 = sphi 0, %s65
    %s80 = sphi 0, %s66
    %s84 = sphi 0, %s84
    %s86 = sphi 0, %s84
    %s87 = sphi 0, %s86
    %s101 = sphi 0, %s87
    %s105 = sphi 0, %s105
    %s107 = sphi 0, %s105
    %s108 = sphi 0, %s107
    %s122 = sphi 0, %s108
    %s128 = sphi 0, %s130
    %s131 = sphi 0, %s128
    %s132 = sphi 0, %s131
    %s148 = sphi 0, %s132
  $region4: #{tpu_custom_call.1} parent=0 // loop_header_branch
    %16 = sbr.rel (%p14) target = $region8
  $region5: #{tpu_custom_call.1} parent=0 // loop_body
    %s18 = ssub.s32 %s13, 1
    %s19 = ssub.s32 %s13, 2
    %s20 = sadd.s32 %s13, 1
    %s22 = sadd.s32 %s21, 1
    %p25 = scmp.eq.s32.totalorder %s13, 1
    %p26 = scmp.ne.s32.totalorder %s21, %s23
    %p27 = scmp.eq.s32.totalorder %s13, 0
    %p28 = por %p26, %p27
    %p29 = scmp.ne.s32.totalorder %s21, %s23
    %p30 = scmp.eq.s32.totalorder %s18, 1
    %p31 = por %p29, %p30
    %p32 = scmp.ne.s32.totalorder %s23, %s24
    %p33 = scmp.eq.s32.totalorder %s18, 0
    %p34 = por %p32, %p33
    %p35 = scmp.ne.s32.totalorder %s23, %s24
    %p36 = scmp.eq.s32.totalorder %s19, 1
    %p37 = por %p35, %p36
    %p39 = scmp.ne.s32.totalorder %s24, %s38
    %p40 = scmp.eq.s32.totalorder %s19, 0
    %p41 = por %p39, %p40
    %s43 = sadd.s32 %s42, 1
    %p46 = scmp.eq.s32.totalorder %s13, 1
    %p47 = scmp.ne.s32.totalorder %s42, %s44
    %p48 = scmp.eq.s32.totalorder %s13, 0
    %p49 = por %p47, %p48
    %p50 = scmp.ne.s32.totalorder %s42, %s44
    %p51 = scmp.eq.s32.totalorder %s18, 1
    %p52 = por %p50, %p51
    %p53 = scmp.ne.s32.totalorder %s44, %s45
    %p54 = scmp.eq.s32.totalorder %s18, 0
    %p55 = por %p53, %p54
    %p56 = scmp.ne.s32.totalorder %s44, %s45
    %p57 = scmp.eq.s32.totalorder %s19, 1
    %p58 = por %p56, %p57
    %p60 = scmp.ne.s32.totalorder %s45, %s59
    %p61 = scmp.eq.s32.totalorder %s19, 0
    %p62 = por %p60, %p61
    %s64 = sadd.s32 %s63, 1
    %p67 = scmp.eq.s32.totalorder %s13, 1
    %p68 = scmp.ne.s32.totalorder %s63, %s65
    %p69 = scmp.eq.s32.totalorder %s13, 0
    %p70 = por %p68, %p69
    %p71 = scmp.ne.s32.totalorder %s63, %s65
    %p72 = scmp.eq.s32.totalorder %s18, 1
    %p73 = por %p71, %p72
    %p74 = scmp.ne.s32.totalorder %s65, %s66
    %p75 = scmp.eq.s32.totalorder %s18, 0
    %p76 = por %p74, %p75
    %p77 = scmp.ne.s32.totalorder %s65, %s66
    %p78 = scmp.eq.s32.totalorder %s19, 1
    %p79 = por %p77, %p78
    %p81 = scmp.ne.s32.totalorder %s66, %s80
    %p82 = scmp.eq.s32.totalorder %s19, 0
    %p83 = por %p81, %p82
    %s85 = sadd.s32 %s84, 1
    %p88 = scmp.eq.s32.totalorder %s13, 1
    %p89 = scmp.ne.s32.totalorder %s84, %s86
    %p90 = scmp.eq.s32.totalorder %s13, 0
    %p91 = por %p89, %p90
    %p92 = scmp.ne.s32.totalorder %s84, %s86
    %p93 = scmp.eq.s32.totalorder %s18, 1
    %p94 = por %p92, %p93
    %p95 = scmp.ne.s32.totalorder %s86, %s87
    %p96 = scmp.eq.s32.totalorder %s18, 0
    %p97 = por %p95, %p96
    %p98 = scmp.ne.s32.totalorder %s86, %s87
    %p99 = scmp.eq.s32.totalorder %s19, 1
    %p100 = por %p98, %p99
    %p102 = scmp.ne.s32.totalorder %s87, %s101
    %p103 = scmp.eq.s32.totalorder %s19, 0
    %p104 = por %p102, %p103
    %s106 = sadd.s32 %s105, 1
    %p109 = scmp.eq.s32.totalorder %s13, 1
    %p110 = scmp.ne.s32.totalorder %s105, %s107
    %p111 = scmp.eq.s32.totalorder %s13, 0
    %p112 = por %p110, %p111
    %p113 = scmp.ne.s32.totalorder %s105, %s107
    %p114 = scmp.eq.s32.totalorder %s18, 1
    %p115 = por %p113, %p114
    %p116 = scmp.ne.s32.totalorder %s107, %s108
    %p117 = scmp.eq.s32.totalorder %s18, 0
    %p118 = por %p116, %p117
    %p119 = scmp.ne.s32.totalorder %s107, %s108
    %p120 = scmp.eq.s32.totalorder %s19, 1
    %p121 = por %p119, %p120
    %p123 = scmp.ne.s32.totalorder %s108, %s122
    %p124 = scmp.eq.s32.totalorder %s19, 0
    %p125 = por %p123, %p124
    %s126 = ssub.s32 %s13, %s20
    %p127 = scmp.eq.s32.totalorder %s126, 0
    %s129 = sadd.s32 %s128, 1
    %s130 = scalar_select %p127, %s128, %s129
    %p133 = pneg %p127
    %p134 = scmp.eq.s32.totalorder %s13, 1
    %p135 = por %p133, %p134
    %p136 = scmp.ne.s32.totalorder %s128, %s131
    %p137 = scmp.eq.s32.totalorder %s13, 0
    %p138 = por %p136, %p137
    %p139 = scmp.ne.s32.totalorder %s128, %s131
    %p140 = scmp.eq.s32.totalorder %s18, 1
    %p141 = por %p139, %p140
    %p142 = scmp.ne.s32.totalorder %s131, %s132
    %p143 = scmp.eq.s32.totalorder %s18, 0
    %p144 = por %p142, %p143
    %p145 = scmp.ne.s32.totalorder %s131, %s132
    %p146 = scmp.eq.s32.totalorder %s19, 1
    %p147 = por %p145, %p146
    %p149 = scmp.ne.s32.totalorder %s132, %s148
    %p150 = scmp.eq.s32.totalorder %s19, 0
    %p151 = por %p149, %p150
    %p152 = scmp.le.s32.totalorder 1, %s13
    %p153 = scmp.lt.s32.totalorder %s13, 3
    %p154 = pnand %p152, %p153
    %p155 = pneg %p154
    // Predicated region
    $region9: #{tpu_custom_call.1} parent=5 // pred_check
      _
    $region10: #{tpu_custom_call.1} parent=5 // pred_check_branch
      %157 = sbr.rel (%p154) target = $region12
    $region11: #{tpu_custom_call.1} parent=5 // pred_region
      %s158 = ssub.s32 %s13, 1
      // Predicated region
      $region13: #{tpu_custom_call.1} parent=11 // pred_check
        %p159 = pneg %p34
      $region14: #{tpu_custom_call.1} parent=11 // pred_check_branch
        %161 = sbr.rel (%p159) target = $region16
      $region15: #{tpu_custom_call.1} parent=11 // pred_region
        _
      $region16: #{tpu_custom_call.1} parent=11 // pred_fallthru
        _
      // Predicated region
      $region17: #{tpu_custom_call.1} parent=11 // pred_check
        %p162 = pneg %p55
      $region18: #{tpu_custom_call.1} parent=11 // pred_check_branch
        %164 = sbr.rel (%p162) target = $region20
      $region19: #{tpu_custom_call.1} parent=11 // pred_region
        _
      $region20: #{tpu_custom_call.1} parent=11 // pred_fallthru
        _
      // Predicated region
      $region21: #{tpu_custom_call.1} parent=11 // pred_check
        %p165 = pneg %p76
      $region22: #{tpu_custom_call.1} parent=11 // pred_check_branch
        %167 = sbr.rel (%p165) target = $region24
      $region23: #{tpu_custom_call.1} parent=11 // pred_region
        _
      $region24: #{tpu_custom_call.1} parent=11 // pred_fallthru
        _
      // Predicated region
      $region25: #{tpu_custom_call.1} parent=11 // pred_check
        %p168 = pneg %p97
      $region26: #{tpu_custom_call.1} parent=11 // pred_check_branch
        %170 = sbr.rel (%p168) target = $region28
      $region27: #{tpu_custom_call.1} parent=11 // pred_region
        _
      $region28: #{tpu_custom_call.1} parent=11 // pred_fallthru
        _
      // Predicated region
      $region29: #{tpu_custom_call.1} parent=11 // pred_check
        %p171 = pneg %p118
      $region30: #{tpu_custom_call.1} parent=11 // pred_check_branch
        %173 = sbr.rel (%p171) target = $region32
      $region31: #{tpu_custom_call.1} parent=11 // pred_region
        _
      $region32: #{tpu_custom_call.1} parent=11 // pred_fallthru
        _
    $region12: #{tpu_custom_call.1} parent=5 // pred_fallthru
      _
    %p174 = scmp.lt.s32.totalorder %s13, 2
    // Predicated region
    $region33: #{tpu_custom_call.1} parent=5 // pred_check
      %p175 = pneg %p174
    $region34: #{tpu_custom_call.1} parent=5 // pred_check_branch
      %177 = sbr.rel (%p175) target = $region36
    $region35: #{tpu_custom_call.1} parent=5 // pred_region
      _
    $region36: #{tpu_custom_call.1} parent=5 // pred_fallthru
      _
    %p178 = scmp.le.s32.totalorder 1, %s13
    %p179 = scmp.lt.s32.totalorder %s13, 3
    %p180 = pnand %p178, %p179
    %p181 = pneg %p180
    // Predicated region
    $region37: #{tpu_custom_call.1} parent=5 // pred_check
      _
    $region38: #{tpu_custom_call.1} parent=5 // pred_check_branch
      %183 = sbr.rel (%p180) target = $region40
    $region39: #{tpu_custom_call.1} parent=5 // pred_region
      %s184 = ssub.s32 %s13, 1
      %p185 = pneg %p34
      %p186 = pneg %p31
      %p187 = pneg %p55
      %p188 = pneg %p52
      %p189 = pneg %p76
      %p190 = pneg %p73
      %p191 = pneg %p97
      %p192 = pneg %p94
      %p193 = pneg %p118
      %p194 = pneg %p115
      %p195 = pneg %p144
      %p196 = pneg %p141
      %s197 = smul.u32 22, %s18
      %p198 = scmp.lt.s32.totalorder %s197, 43
      %s199 = scalar_select %p198, %s197, 43
      %s200 = smul.addr %s199, 4
      %s201 = scalar_lea.vmem %s6, %s200
      %s202 = smul.u32 22, %s18
      %p203 = scmp.lt.s32.totalorder %s202, 43
      %s204 = scalar_select %p203, %s202, 43
      %s205 = smul.addr %s204, 4
      %s206 = scalar_lea.vmem %s6, %s205
      %s207 = smul.u32 22, %s18
      %s209 = smul.u32 %s18, 176
      %s210 = scalar_lea.vmem %s1, %s209
      %p212 = scmp.lt.u32.totalorder 214, 8
      %p213 = pneg %p212
      // Predicated region
      $region41: #{tpu_custom_call.1} parent=39 // pred_check
        _
      $region42: #{tpu_custom_call.1} parent=39 // pred_check_branch
        %215 = sbr.rel (%p212) target = $region44
      $region43: #{tpu_custom_call.1} parent=39 // pred_region
        %s230 = sand.u32 214, 7
        %p231 = scmp.eq.s32.totalorder %s230, 0
        %p232 = pneg %p231
        // Predicated region
        $region56: #{tpu_custom_call.1} parent=43 // pred_check
          _
        $region57: #{tpu_custom_call.1} parent=43 // pred_check_branch
          %234 = sbr.rel (%p231) target = $region59
        $region58: #{tpu_custom_call.1} parent=43 // pred_region
          %s235 = sand.u32 214, 7
          %s236 = ssub.s32 214, %s235
          %s237 = scalar_lea.vmem %s210, %s236
          %s238 = ssub.s32 214, %s235
          %s239 = scalar_lea.vmem [#allocation2], %s238
          loop: start=0, step=1, limit=1
          $region60: #{tpu_custom_call.1} parent=58 // loop_pre_header
            _
          $region61: #{tpu_custom_call.1} parent=58 // loop_header
            %s241 = sphi 0, %s245
            %p242 = scmp.ge.s32.totalorder %s241, 1
            %s246 = sphi %s210, %s210
            %s247 = sphi [#allocation2], [#allocation2]
          $region62: #{tpu_custom_call.1} parent=58 // loop_header_branch
            %244 = sbr.rel (%p242) target = $region66
          $region63: #{tpu_custom_call.1} parent=58 // loop_body
            %v248 = vld [vmem:[%s246] sm:$0xff]
            %249 = vst [vmem:[%s247] sm:$0xff] %v248
            %v250 = vld [vmem:[%s246 + $0x8] sm:$0xff]
            %251 = vst [vmem:[%s247 + $0x8] sm:$0xff] %v250
            %v252 = vld [vmem:[%s246 + $0x10] sm:$0xff]
            %253 = vst [vmem:[%s247 + $0x10] sm:$0xff] %v252
            %v254 = vld [vmem:[%s246 + $0x18] sm:$0xff]
            %255 = vst [vmem:[%s247 + $0x18] sm:$0xff] %v254
            %v256 = vld [vmem:[%s246 + $0x20] sm:$0xff]
            %257 = vst [vmem:[%s247 + $0x20] sm:$0xff] %v256
            %v258 = vld [vmem:[%s246 + $0x28] sm:$0xff]
            %259 = vst [vmem:[%s247 + $0x28] sm:$0xff] %v258
            %v260 = vld [vmem:[%s246 + $0x30] sm:$0xff]
            %261 = vst [vmem:[%s247 + $0x30] sm:$0xff] %v260
            %v262 = vld [vmem:[%s246 + $0x38] sm:$0xff]
            %263 = vst [vmem:[%s247 + $0x38] sm:$0xff] %v262
            %v264 = vld [vmem:[%s246 + $0x40] sm:$0xff]
            %265 = vst [vmem:[%s247 + $0x40] sm:$0xff] %v264
            %v266 = vld [vmem:[%s246 + $0x48] sm:$0xff]
            %267 = vst [vmem:[%s247 + $0x48] sm:$0xff] %v266
            %v268 = vld [vmem:[%s246 + $0x50] sm:$0xff]
            %269 = vst [vmem:[%s247 + $0x50] sm:$0xff] %v268
            %v270 = vld [vmem:[%s246 + $0x58] sm:$0xff]
            %271 = vst [vmem:[%s247 + $0x58] sm:$0xff] %v270
            %v272 = vld [vmem:[%s246 + $0x60] sm:$0xff]
            %273 = vst [vmem:[%s247 + $0x60] sm:$0xff] %v272
            %v274 = vld [vmem:[%s246 + $0x68] sm:$0xff]
            %275 = vst [vmem:[%s247 + $0x68] sm:$0xff] %v274
            %v276 = vld [vmem:[%s246 + $0x70] sm:$0xff]
            %277 = vst [vmem:[%s247 + $0x70] sm:$0xff] %v276
            %v278 = vld [vmem:[%s246 + $0x78] sm:$0xff]
            %279 = vst [vmem:[%s247 + $0x78] sm:$0xff] %v278
            %v280 = vld [vmem:[%s246 + $0x80] sm:$0xff]
            %281 = vst [vmem:[%s247 + $0x80] sm:$0xff] %v280
            %v282 = vld [vmem:[%s246 + $0x88] sm:$0xff]
            %283 = vst [vmem:[%s247 + $0x88] sm:$0xff] %v282
            %v284 = vld [vmem:[%s246 + $0x90] sm:$0xff]
            %285 = vst [vmem:[%s247 + $0x90] sm:$0xff] %v284
            %v286 = vld [vmem:[%s246 + $0x98] sm:$0xff]
            %287 = vst [vmem:[%s247 + $0x98] sm:$0xff] %v286
            %v288 = vld [vmem:[%s246 + $0xa0] sm:$0xff]
            %289 = vst [vmem:[%s247 + $0xa0] sm:$0xff] %v288
            %v290 = vld [vmem:[%s246 + $0xa8] sm:$0xff]
            %291 = vst [vmem:[%s247 + $0xa8] sm:$0xff] %v290
            %v292 = vld [vmem:[%s246 + $0xb0] sm:$0xff]
            %293 = vst [vmem:[%s247 + $0xb0] sm:$0xff] %v292
            %v294 = vld [vmem:[%s246 + $0xb8] sm:$0xff]
            %295 = vst [vmem:[%s247 + $0xb8] sm:$0xff] %v294
            %v296 = vld [vmem:[%s246 + $0xc0] sm:$0xff]
            %297 = vst [vmem:[%s247 + $0xc0] sm:$0xff] %v296
            %v298 = vld [vmem:[%s246 + $0xc8] sm:$0xff]
            %299 = vst [vmem:[%s247 + $0xc8] sm:$0xff] %v298
          $region64: #{tpu_custom_call.1} parent=58 // loop_footer
            %s245 = sadd.s32 1, %s241
          $region65: #{tpu_custom_call.1} parent=58 // loop_footer_branch
            %240 = sbr.rel target = $region61
          $region66: #{tpu_custom_call.1} parent=58 // loop_exit
            _
          %s300 = sshllo.u32 0, %s235
          loop: start=0, step=1, limit=1
          $region67: #{tpu_custom_call.1} parent=58 // loop_pre_header
            _
          $region68: #{tpu_custom_call.1} parent=58 // loop_header
            %s302 = sphi 0, %s306
            %p303 = scmp.ge.s32.totalorder %s302, 1
            %s307 = sphi %s237, %s237
            %s308 = sphi %s239, %s239
          $region69: #{tpu_custom_call.1} parent=58 // loop_header_branch
            %305 = sbr.rel (%p303) target = $region73
          $region70: #{tpu_custom_call.1} parent=58 // loop_body
            %v309 = vld [vmem:[%s307] sm:%s300]
            %310 = vst [vmem:[%s308] sm:%s300] %v309
          $region71: #{tpu_custom_call.1} parent=58 // loop_footer
            %s306 = sadd.s32 1, %s302
          $region72: #{tpu_custom_call.1} parent=58 // loop_footer_branch
            %301 = sbr.rel target = $region68
          $region73: #{tpu_custom_call.1} parent=58 // loop_exit
            _
        $region59: #{tpu_custom_call.1} parent=43 // pred_fallthru
          _
      $region44: #{tpu_custom_call.1} parent=39 // pred_fallthru
        _
      // Predicated region
      $region45: #{tpu_custom_call.1} parent=39 // pred_check
        %p216 = pneg %p212
      $region46: #{tpu_custom_call.1} parent=39 // pred_check_branch
        %218 = sbr.rel (%p216) target = $region48
      $region47: #{tpu_custom_call.1} parent=39 // pred_region
        %s219 = sshllo.u32 0, 214
        loop: start=0, step=1, limit=1
        $region49: #{tpu_custom_call.1} parent=47 // loop_pre_header
          _
        $region50: #{tpu_custom_call.1} parent=47 // loop_header
          %s221 = sphi 0, %s225
          %p222 = scmp.ge.s32.totalorder %s221, 1
          %s226 = sphi %s210, %s210
          %s227 = sphi [#allocation2], [#allocation2]
        $region51: #{tpu_custom_call.1} parent=47 // loop_header_branch
          %224 = sbr.rel (%p222) target = $region55
        $region52: #{tpu_custom_call.1} parent=47 // loop_body
          %v228 = vld [vmem:[%s226] sm:%s219]
          %229 = vst [vmem:[%s227] sm:%s219] %v228
        $region53: #{tpu_custom_call.1} parent=47 // loop_footer
          %s225 = sadd.s32 1, %s221
        $region54: #{tpu_custom_call.1} parent=47 // loop_footer_branch
          %220 = sbr.rel target = $region50
        $region55: #{tpu_custom_call.1} parent=47 // loop_exit
          _
      $region48: #{tpu_custom_call.1} parent=39 // pred_fallthru
        _
      // Predicated region
      $region74: #{tpu_custom_call.1} parent=39 // pred_check
        _
      $region75: #{tpu_custom_call.1} parent=39 // pred_check_branch
        %313 = sbr.rel (0) target = $region77
      $region76: #{tpu_custom_call.1} parent=39 // pred_region
        %314 = vsyncadd [#allocation3], 3424
      $region77: #{tpu_custom_call.1} parent=39 // pred_fallthru
        _
      %s315 = smul.u32 214, 1
      %s316 = sshll.u32 %s315, 4
      %317 = dma.done [#allocation3], %s316
      %v318 = vld [vmem:[#allocation2] sm:$0xff]
      %v319 = vld [vmem:[#allocation2 + $0x8] sm:$0xff]
      %v320 = vld [vmem:[#allocation2 + $0x10] sm:$0xff]
      %v321 = vld [vmem:[#allocation2 + $0x18] sm:$0xff]
      %v322 = vld [vmem:[#allocation2 + $0x20] sm:$0xff]
      %v323 = vld [vmem:[#allocation2 + $0x28] sm:$0xff]
      %v324 = vld [vmem:[#allocation2 + $0x30] sm:$0xff]
      %v325 = vld [vmem:[#allocation2 + $0x38] sm:$0xff]
      %v326 = vld [vmem:[#allocation2 + $0x40] sm:$0xff]
      %v327 = vld [vmem:[#allocation2 + $0x48] sm:$0xff]
      %v328 = vld [vmem:[#allocation2 + $0x50] sm:$0xff]
      %v329 = vld [vmem:[#allocation2 + $0x58] sm:$0xff]
      %v330 = vld [vmem:[#allocation2 + $0x60] sm:$0xff]
      %v331 = vld [vmem:[#allocation2 + $0x68] sm:$0xff]
      %v332 = vld [vmem:[#allocation2 + $0x70] sm:$0xff]
      %v333 = vld [vmem:[#allocation2 + $0x78] sm:$0xff]
      %v334 = vld [vmem:[#allocation2 + $0x80] sm:$0xff]
      %v335 = vld [vmem:[#allocation2 + $0x88] sm:$0xff]
      %v336 = vld [vmem:[#allocation2 + $0x90] sm:$0xff]
      %v337 = vld [vmem:[#allocation2 + $0x98] sm:$0xff]
      %v338 = vld [vmem:[#allocation2 + $0xa0] sm:$0xff]
      %v339 = vld [vmem:[#allocation2 + $0xa8] sm:$0xff]
      %v340 = vld [vmem:[#allocation2 + $0x1] sm:$0xff]
      %v341 = vld [vmem:[#allocation2 + $0x9] sm:$0xff]
      %v342 = vld [vmem:[#allocation2 + $0x11] sm:$0xff]
      %v343 = vld [vmem:[#allocation2 + $0x19] sm:$0xff]
      %v344 = vld [vmem:[#allocation2 + $0x21] sm:$0xff]
      %v345 = vld [vmem:[#allocation2 + $0x29] sm:$0xff]
      %v346 = vld [vmem:[#allocation2 + $0x31] sm:$0xff]
      %v347 = vld [vmem:[#allocation2 + $0x39] sm:$0xff]
      %v348 = vld [vmem:[#allocation2 + $0x41] sm:$0xff]
      %v349 = vld [vmem:[#allocation2 + $0x49] sm:$0xff]
      %v350 = vld [vmem:[#allocation2 + $0x51] sm:$0xff]
      %v351 = vld [vmem:[#allocation2 + $0x59] sm:$0xff]
      %v352 = vld [vmem:[#allocation2 + $0x61] sm:$0xff]
      %v353 = vld [vmem:[#allocation2 + $0x69] sm:$0xff]
      %v354 = vld [vmem:[#allocation2 + $0x71] sm:$0xff]
      %v355 = vld [vmem:[#allocation2 + $0x79] sm:$0xff]
      %v356 = vld [vmem:[#allocation2 + $0x81] sm:$0xff]
      %v357 = vld [vmem:[#allocation2 + $0x89] sm:$0xff]
      %v358 = vld [vmem:[#allocation2 + $0x91] sm:$0xff]
      %v359 = vld [vmem:[#allocation2 + $0x99] sm:$0xff]
      %v360 = vld [vmem:[#allocation2 + $0xa1] sm:$0xff]
      %v361 = vld [vmem:[#allocation2 + $0xa9] sm:$0xff]
      %v362 = vld [vmem:[#allocation2 + $0x2] sm:$0xff]
      %v363 = vld [vmem:[#allocation2 + $0xa] sm:$0xff]
      %v364 = vld [vmem:[#allocation2 + $0x12] sm:$0xff]
      %v365 = vld [vmem:[#allocation2 + $0x1a] sm:$0xff]
      %v366 = vld [vmem:[#allocation2 + $0x22] sm:$0xff]
      %v367 = vld [vmem:[#allocation2 + $0x2a] sm:$0xff]
      %v368 = vld [vmem:[#allocation2 + $0x32] sm:$0xff]
      %v369 = vld [vmem:[#allocation2 + $0x3a] sm:$0xff]
      %v370 = vld [vmem:[#allocation2 + $0x42] sm:$0xff]
      %v371 = vld [vmem:[#allocation2 + $0x4a] sm:$0xff]
      %v372 = vld [vmem:[#allocation2 + $0x52] sm:$0xff]
      %v373 = vld [vmem:[#allocation2 + $0x5a] sm:$0xff]
      %v374 = vld [vmem:[#allocation2 + $0x62] sm:$0xff]
      %v375 = vld [vmem:[#allocation2 + $0x6a] sm:$0xff]
      %v376 = vld [vmem:[#allocation2 + $0x72] sm:$0xff]
      %v377 = vld [vmem:[#allocation2 + $0x7a] sm:$0xff]
      %v378 = vld [vmem:[#allocation2 + $0x82] sm:$0xff]
      %v379 = vld [vmem:[#allocation2 + $0x8a] sm:$0xff]
      %v380 = vld [vmem:[#allocation2 + $0x92] sm:$0xff]
      %v381 = vld [vmem:[#allocation2 + $0x9a] sm:$0xff]
      %v382 = vld [vmem:[#allocation2 + $0xa2] sm:$0xff]
      %v383 = vld [vmem:[#allocation2 + $0xaa] sm:$0xff]
      %v384 = vld [vmem:[#allocation2 + $0xb2] sm:$0xff]
      %v385 = vld [vmem:[#allocation2 + $0xba] sm:$0xff]
      %v386 = vld [vmem:[#allocation2 + $0x13] sm:$0xff]
      %v387 = vld [vmem:[#allocation2 + $0x1b] sm:$0xff]
      %v388 = vld [vmem:[#allocation2 + $0x23] sm:$0xff]
      %v389 = vld [vmem:[#allocation2 + $0x2b] sm:$0xff]
      %v390 = vld [vmem:[#allocation2 + $0x33] sm:$0xff]
      %v391 = vld [vmem:[#allocation2 + $0x3b] sm:$0xff]
      %v392 = vld [vmem:[#allocation2 + $0x43] sm:$0xff]
      %v393 = vld [vmem:[#allocation2 + $0x4b] sm:$0xff]
      %v394 = vld [vmem:[#allocation2 + $0x53] sm:$0xff]
      %v395 = vld [vmem:[#allocation2 + $0x5b] sm:$0xff]
      %v396 = vld [vmem:[#allocation2 + $0x63] sm:$0xff]
      %v397 = vld [vmem:[#allocation2 + $0x6b] sm:$0xff]
      %v398 = vld [vmem:[#allocation2 + $0x73] sm:$0xff]
      %v399 = vld [vmem:[#allocation2 + $0x7b] sm:$0xff]
      %v400 = vld [vmem:[#allocation2 + $0x83] sm:$0xff]
      %v401 = vld [vmem:[#allocation2 + $0x8b] sm:$0xff]
      %v402 = vld [vmem:[#allocation2 + $0x93] sm:$0xff]
      %v403 = vld [vmem:[#allocation2 + $0x9b] sm:$0xff]
      %v404 = vld [vmem:[#allocation2 + $0xa3] sm:$0xff]
      %v405 = vld [vmem:[#allocation2 + $0xab] sm:$0xff]
      %v406 = vld [vmem:[#allocation2 + $0xb3] sm:$0xff]
      %v407 = vld [vmem:[#allocation2 + $0xbb] sm:$0xff]
      %v408 = vld [vmem:[#allocation2 + $0x14] sm:$0xff]
      %v409 = vld [vmem:[#allocation2 + $0x1c] sm:$0xff]
      %v410 = vld [vmem:[#allocation2 + $0x24] sm:$0xff]
      %v411 = vld [vmem:[#allocation2 + $0x2c] sm:$0xff]
      %v412 = vld [vmem:[#allocation2 + $0x34] sm:$0xff]
      %v413 = vld [vmem:[#allocation2 + $0x3c] sm:$0xff]
      %v414 = vld [vmem:[#allocation2 + $0x44] sm:$0xff]
      %v415 = vld [vmem:[#allocation2 + $0x4c] sm:$0xff]
      %v416 = vld [vmem:[#allocation2 + $0x54] sm:$0xff]
      %v417 = vld [vmem:[#allocation2 + $0x5c] sm:$0xff]
      %v418 = vld [vmem:[#allocation2 + $0x64] sm:$0xff]
      %v419 = vld [vmem:[#allocation2 + $0x6c] sm:$0xff]
      %v420 = vld [vmem:[#allocation2 + $0x74] sm:$0xff]
      %v421 = vld [vmem:[#allocation2 + $0x7c] sm:$0xff]
      %v422 = vld [vmem:[#allocation2 + $0x84] sm:$0xff]
      %v423 = vld [vmem:[#allocation2 + $0x8c] sm:$0xff]
      %v424 = vld [vmem:[#allocation2 + $0x94] sm:$0xff]
      %v425 = vld [vmem:[#allocation2 + $0x9c] sm:$0xff]
      %v426 = vld [vmem:[#allocation2 + $0xa4] sm:$0xff]
      %v427 = vld [vmem:[#allocation2 + $0xac] sm:$0xff]
      %v428 = vld [vmem:[#allocation2 + $0xb4] sm:$0xff]
      %v429 = vld [vmem:[#allocation2 + $0xbc] sm:$0xff]
      %v430 = vld [vmem:[#allocation2 + $0xc4] sm:$0xff]
      %v431 = vld [vmem:[#allocation2 + $0xcc] sm:$0xff]
      %v432 = vld [vmem:[#allocation2 + $0x25] sm:$0xff]
      %v433 = vld [vmem:[#allocation2 + $0x2d] sm:$0xff]
      %v434 = vld [vmem:[#allocation2 + $0x35] sm:$0xff]
      %v435 = vld [vmem:[#allocation2 + $0x3d] sm:$0xff]
      %v436 = vld [vmem:[#allocation2 + $0x45] sm:$0xff]
      %v437 = vld [vmem:[#allocation2 + $0x4d] sm:$0xff]
      %v438 = vld [vmem:[#allocation2 + $0x55] sm:$0xff]
      %v439 = vld [vmem:[#allocation2 + $0x5d] sm:$0xff]
      %v440 = vld [vmem:[#allocation2 + $0x65] sm:$0xff]
      %v441 = vld [vmem:[#allocation2 + $0x6d] sm:$0xff]
      %v442 = vld [vmem:[#allocation2 + $0x75] sm:$0xff]
      %v443 = vld [vmem:[#allocation2 + $0x7d] sm:$0xff]
      %v444 = vld [vmem:[#allocation2 + $0x85] sm:$0xff]
      %v445 = vld [vmem:[#allocation2 + $0x8d] sm:$0xff]
      %v446 = vld [vmem:[#allocation2 + $0x95] sm:$0xff]
      %v447 = vld [vmem:[#allocation2 + $0x9d] sm:$0xff]
      %v448 = vld [vmem:[#allocation2 + $0xa5] sm:$0xff]
      %v449 = vld [vmem:[#allocation2 + $0xad] sm:$0xff]
      %v450 = vld [vmem:[#allocation2 + $0xb5] sm:$0xff]
      %v451 = vld [vmem:[#allocation2 + $0xbd] sm:$0xff]
      %v452 = vld [vmem:[#allocation2 + $0xc5] sm:$0xff]
      %v453 = vld [vmem:[#allocation2 + $0xcd] sm:$0xff]
      %v454 = vld [vmem:[#allocation2 + $0x26] sm:$0xff]
      %v455 = vld [vmem:[#allocation2 + $0x2e] sm:$0xff]
      %v456 = vld [vmem:[#allocation2 + $0x36] sm:$0xff]
      %v457 = vld [vmem:[#allocation2 + $0x3e] sm:$0xff]
      %v458 = vld [vmem:[#allocation2 + $0x46] sm:$0xff]
      %v459 = vld [vmem:[#allocation2 + $0x4e] sm:$0xff]
      %v460 = vld [vmem:[#allocation2 + $0x56] sm:$0xff]
      %v461 = vld [vmem:[#allocation2 + $0x5e] sm:$0xff]
      %v462 = vld [vmem:[#allocation2 + $0x66] sm:$0xff]
      %v463 = vld [vmem:[#allocation2 + $0x6e] sm:$0xff]
      %v464 = vld [vmem:[#allocation2 + $0x76] sm:$0xff]
      %v465 = vld [vmem:[#allocation2 + $0x7e] sm:$0xff]
      %v466 = vld [vmem:[#allocation2 + $0x86] sm:$0xff]
      %v467 = vld [vmem:[#allocation2 + $0x8e] sm:$0xff]
      %v468 = vld [vmem:[#allocation2 + $0x96] sm:$0xff]
      %v469 = vld [vmem:[#allocation2 + $0x9e] sm:$0xff]
      %v470 = vld [vmem:[#allocation2 + $0xa6] sm:$0xff]
      %v471 = vld [vmem:[#allocation2 + $0xae] sm:$0xff]
      %v472 = vld [vmem:[#allocation2 + $0xb6] sm:$0xff]
      %v473 = vld [vmem:[#allocation2 + $0xbe] sm:$0xff]
      %v474 = vld [vmem:[#allocation2 + $0xc6] sm:$0xff]
      %v475 = vld [vmem:[#allocation2 + $0xce] sm:$0xff]
      %498 = vrot.lane.b32.xlu0 %v340, 3
      %v499 = vpop.permute.xlu0 %498
      %500 = vrot.lane.b32.xlu0 %v341, 3
      %v501 = vpop.permute.xlu0 %500
      %502 = vrot.lane.b32.xlu0 %v342, 3
      %v503 = vpop.permute.xlu0 %502
      %504 = vrot.lane.b32.xlu0 %v343, 3
      %v505 = vpop.permute.xlu0 %504
      %506 = vrot.lane.b32.xlu0 %v344, 3
      %v507 = vpop.permute.xlu0 %506
      %508 = vrot.lane.b32.xlu0 %v345, 3
      %v509 = vpop.permute.xlu0 %508
      %510 = vrot.lane.b32.xlu0 %v346, 3
      %v511 = vpop.permute.xlu0 %510
      %512 = vrot.lane.b32.xlu0 %v347, 3
      %v513 = vpop.permute.xlu0 %512
      %514 = vrot.lane.b32.xlu0 %v348, 3
      %v515 = vpop.permute.xlu0 %514
      %516 = vrot.lane.b32.xlu0 %v349, 3
      %v517 = vpop.permute.xlu0 %516
      %518 = vrot.lane.b32.xlu0 %v350, 3
      %v519 = vpop.permute.xlu0 %518
      %520 = vrot.lane.b32.xlu0 %v351, 3
      %v521 = vpop.permute.xlu0 %520
      %522 = vrot.lane.b32.xlu0 %v352, 3
      %v523 = vpop.permute.xlu0 %522
      %524 = vrot.lane.b32.xlu0 %v353, 3
      %v525 = vpop.permute.xlu0 %524
      %526 = vrot.lane.b32.xlu0 %v354, 3
      %v527 = vpop.permute.xlu0 %526
      %528 = vrot.lane.b32.xlu0 %v355, 3
      %v529 = vpop.permute.xlu0 %528
      %530 = vrot.lane.b32.xlu0 %v356, 3
      %v531 = vpop.permute.xlu0 %530
      %532 = vrot.lane.b32.xlu0 %v357, 3
      %v533 = vpop.permute.xlu0 %532
      %534 = vrot.lane.b32.xlu0 %v358, 3
      %v535 = vpop.permute.xlu0 %534
      %536 = vrot.lane.b32.xlu0 %v359, 3
      %v537 = vpop.permute.xlu0 %536
      %538 = vrot.lane.b32.xlu0 %v360, 3
      %v539 = vpop.permute.xlu0 %538
      %540 = vrot.lane.b32.xlu0 %v361, 3
      %v541 = vpop.permute.xlu0 %540
      %586 = vrot.lane.b32.xlu0 %v362, 6
      %v587 = vpop.permute.xlu0 %586
      %588 = vrot.lane.b32.xlu0 %v363, 6
      %v589 = vpop.permute.xlu0 %588
      %590 = vrot.lane.b32.xlu0 %v364, 6
      %v591 = vpop.permute.xlu0 %590
      %592 = vrot.lane.b32.xlu0 %v365, 6
      %v593 = vpop.permute.xlu0 %592
      %594 = vrot.lane.b32.xlu0 %v366, 6
      %v595 = vpop.permute.xlu0 %594
      %596 = vrot.lane.b32.xlu0 %v367, 6
      %v597 = vpop.permute.xlu0 %596
      %598 = vrot.lane.b32.xlu0 %v368, 6
      %v599 = vpop.permute.xlu0 %598
      %600 = vrot.lane.b32.xlu0 %v369, 6
      %v601 = vpop.permute.xlu0 %600
      %602 = vrot.lane.b32.xlu0 %v370, 6
      %v603 = vpop.permute.xlu0 %602
      %604 = vrot.lane.b32.xlu0 %v371, 6
      %v605 = vpop.permute.xlu0 %604
      %606 = vrot.lane.b32.xlu0 %v372, 6
      %v607 = vpop.permute.xlu0 %606
      %608 = vrot.lane.b32.xlu0 %v373, 6
      %v609 = vpop.permute.xlu0 %608
      %610 = vrot.lane.b32.xlu0 %v374, 6
      %v611 = vpop.permute.xlu0 %610
      %612 = vrot.lane.b32.xlu0 %v375, 6
      %v613 = vpop.permute.xlu0 %612
      %614 = vrot.lane.b32.xlu0 %v376, 6
      %v615 = vpop.permute.xlu0 %614
      %616 = vrot.lane.b32.xlu0 %v377, 6
      %v617 = vpop.permute.xlu0 %616
      %618 = vrot.lane.b32.xlu0 %v378, 6
      %v619 = vpop.permute.xlu0 %618
      %620 = vrot.lane.b32.xlu0 %v379, 6
      %v621 = vpop.permute.xlu0 %620
      %622 = vrot.lane.b32.xlu0 %v380, 6
      %v623 = vpop.permute.xlu0 %622
      %624 = vrot.lane.b32.xlu0 %v381, 6
      %v625 = vpop.permute.xlu0 %624
      %626 = vrot.lane.b32.xlu0 %v382, 6
      %v627 = vpop.permute.xlu0 %626
      %628 = vrot.lane.b32.xlu0 %v383, 6
      %v629 = vpop.permute.xlu0 %628
      %654 = vrot.lane.b32.xlu0 %v364, 9
      %v655 = vpop.permute.xlu0 %654
      %656 = vrot.lane.b32.xlu0 %v365, 9
      %v657 = vpop.permute.xlu0 %656
      %658 = vrot.lane.b32.xlu0 %v366, 9
      %v659 = vpop.permute.xlu0 %658
      %660 = vrot.lane.b32.xlu0 %v367, 9
      %v661 = vpop.permute.xlu0 %660
      %662 = vrot.lane.b32.xlu0 %v368, 9
      %v663 = vpop.permute.xlu0 %662
      %664 = vrot.lane.b32.xlu0 %v369, 9
      %v665 = vpop.permute.xlu0 %664
      %666 = vrot.lane.b32.xlu0 %v370, 9
      %v667 = vpop.permute.xlu0 %666
      %668 = vrot.lane.b32.xlu0 %v371, 9
      %v669 = vpop.permute.xlu0 %668
      %670 = vrot.lane.b32.xlu0 %v372, 9
      %v671 = vpop.permute.xlu0 %670
      %672 = vrot.lane.b32.xlu0 %v373, 9
      %v673 = vpop.permute.xlu0 %672
      %674 = vrot.lane.b32.xlu0 %v374, 9
      %v675 = vpop.permute.xlu0 %674
      %676 = vrot.lane.b32.xlu0 %v375, 9
      %v677 = vpop.permute.xlu0 %676
      %678 = vrot.lane.b32.xlu0 %v376, 9
      %v679 = vpop.permute.xlu0 %678
      %680 = vrot.lane.b32.xlu0 %v377, 9
      %v681 = vpop.permute.xlu0 %680
      %682 = vrot.lane.b32.xlu0 %v378, 9
      %v683 = vpop.permute.xlu0 %682
      %684 = vrot.lane.b32.xlu0 %v379, 9
      %v685 = vpop.permute.xlu0 %684
      %686 = vrot.lane.b32.xlu0 %v380, 9
      %v687 = vpop.permute.xlu0 %686
      %688 = vrot.lane.b32.xlu0 %v381, 9
      %v689 = vpop.permute.xlu0 %688
      %690 = vrot.lane.b32.xlu0 %v382, 9
      %v691 = vpop.permute.xlu0 %690
      %692 = vrot.lane.b32.xlu0 %v383, 9
      %v693 = vpop.permute.xlu0 %692
      %694 = vrot.lane.b32.xlu0 %v384, 9
      %v695 = vpop.permute.xlu0 %694
      %696 = vrot.lane.b32.xlu0 %v385, 9
      %v697 = vpop.permute.xlu0 %696
      %742 = vrot.lane.b32.xlu0 %v386, 12
      %v743 = vpop.permute.xlu0 %742
      %744 = vrot.lane.b32.xlu0 %v387, 12
      %v745 = vpop.permute.xlu0 %744
      %746 = vrot.lane.b32.xlu0 %v388, 12
      %v747 = vpop.permute.xlu0 %746
      %748 = vrot.lane.b32.xlu0 %v389, 12
      %v749 = vpop.permute.xlu0 %748
      %750 = vrot.lane.b32.xlu0 %v390, 12
      %v751 = vpop.permute.xlu0 %750
      %752 = vrot.lane.b32.xlu0 %v391, 12
      %v753 = vpop.permute.xlu0 %752
      %754 = vrot.lane.b32.xlu0 %v392, 12
      %v755 = vpop.permute.xlu0 %754
      %756 = vrot.lane.b32.xlu0 %v393, 12
      %v757 = vpop.permute.xlu0 %756
      %758 = vrot.lane.b32.xlu0 %v394, 12
      %v759 = vpop.permute.xlu0 %758
      %760 = vrot.lane.b32.xlu0 %v395, 12
      %v761 = vpop.permute.xlu0 %760
      %762 = vrot.lane.b32.xlu0 %v396, 12
      %v763 = vpop.permute.xlu0 %762
      %764 = vrot.lane.b32.xlu0 %v397, 12
      %v765 = vpop.permute.xlu0 %764
      %766 = vrot.lane.b32.xlu0 %v398, 12
      %v767 = vpop.permute.xlu0 %766
      %768 = vrot.lane.b32.xlu0 %v399, 12
      %v769 = vpop.permute.xlu0 %768
      %770 = vrot.lane.b32.xlu0 %v400, 12
      %v771 = vpop.permute.xlu0 %770
      %772 = vrot.lane.b32.xlu0 %v401, 12
      %v773 = vpop.permute.xlu0 %772
      %774 = vrot.lane.b32.xlu0 %v402, 12
      %v775 = vpop.permute.xlu0 %774
      %776 = vrot.lane.b32.xlu0 %v403, 12
      %v777 = vpop.permute.xlu0 %776
      %778 = vrot.lane.b32.xlu0 %v404, 12
      %v779 = vpop.permute.xlu0 %778
      %780 = vrot.lane.b32.xlu0 %v405, 12
      %v781 = vpop.permute.xlu0 %780
      %782 = vrot.lane.b32.xlu0 %v406, 12
      %v783 = vpop.permute.xlu0 %782
      %784 = vrot.lane.b32.xlu0 %v407, 12
      %v785 = vpop.permute.xlu0 %784
      %830 = vrot.lane.b32.xlu0 %v408, 15
      %v831 = vpop.permute.xlu0 %830
      %832 = vrot.lane.b32.xlu0 %v409, 15
      %v833 = vpop.permute.xlu0 %832
      %834 = vrot.lane.b32.xlu0 %v410, 15
      %v835 = vpop.permute.xlu0 %834
      %836 = vrot.lane.b32.xlu0 %v411, 15
      %v837 = vpop.permute.xlu0 %836
      %838 = vrot.lane.b32.xlu0 %v412, 15
      %v839 = vpop.permute.xlu0 %838
      %840 = vrot.lane.b32.xlu0 %v413, 15
      %v841 = vpop.permute.xlu0 %840
      %842 = vrot.lane.b32.xlu0 %v414, 15
      %v843 = vpop.permute.xlu0 %842
      %844 = vrot.lane.b32.xlu0 %v415, 15
      %v845 = vpop.permute.xlu0 %844
      %846 = vrot.lane.b32.xlu0 %v416, 15
      %v847 = vpop.permute.xlu0 %846
      %848 = vrot.lane.b32.xlu0 %v417, 15
      %v849 = vpop.permute.xlu0 %848
      %850 = vrot.lane.b32.xlu0 %v418, 15
      %v851 = vpop.permute.xlu0 %850
      %852 = vrot.lane.b32.xlu0 %v419, 15
      %v853 = vpop.permute.xlu0 %852
      %854 = vrot.lane.b32.xlu0 %v420, 15
      %v855 = vpop.permute.xlu0 %854
      %856 = vrot.lane.b32.xlu0 %v421, 15
      %v857 = vpop.permute.xlu0 %856
      %858 = vrot.lane.b32.xlu0 %v422, 15
      %v859 = vpop.permute.xlu0 %858
      %860 = vrot.lane.b32.xlu0 %v423, 15
      %v861 = vpop.permute.xlu0 %860
      %862 = vrot.lane.b32.xlu0 %v424, 15
      %v863 = vpop.permute.xlu0 %862
      %864 = vrot.lane.b32.xlu0 %v425, 15
      %v865 = vpop.permute.xlu0 %864
      %866 = vrot.lane.b32.xlu0 %v426, 15
      %v867 = vpop.permute.xlu0 %866
      %868 = vrot.lane.b32.xlu0 %v427, 15
      %v869 = vpop.permute.xlu0 %868
      %870 = vrot.lane.b32.xlu0 %v428, 15
      %v871 = vpop.permute.xlu0 %870
      %872 = vrot.lane.b32.xlu0 %v429, 15
      %v873 = vpop.permute.xlu0 %872
      %898 = vrot.lane.b32.xlu0 %v410, 18
      %v899 = vpop.permute.xlu0 %898
      %900 = vrot.lane.b32.xlu0 %v411, 18
      %v901 = vpop.permute.xlu0 %900
      %902 = vrot.lane.b32.xlu0 %v412, 18
      %v903 = vpop.permute.xlu0 %902
      %904 = vrot.lane.b32.xlu0 %v413, 18
      %v905 = vpop.permute.xlu0 %904
      %906 = vrot.lane.b32.xlu0 %v414, 18
      %v907 = vpop.permute.xlu0 %906
      %908 = vrot.lane.b32.xlu0 %v415, 18
      %v909 = vpop.permute.xlu0 %908
      %910 = vrot.lane.b32.xlu0 %v416, 18
      %v911 = vpop.permute.xlu0 %910
      %912 = vrot.lane.b32.xlu0 %v417, 18
      %v913 = vpop.permute.xlu0 %912
      %914 = vrot.lane.b32.xlu0 %v418, 18
      %v915 = vpop.permute.xlu0 %914
      %916 = vrot.lane.b32.xlu0 %v419, 18
      %v917 = vpop.permute.xlu0 %916
      %918 = vrot.lane.b32.xlu0 %v420, 18
      %v919 = vpop.permute.xlu0 %918
      %920 = vrot.lane.b32.xlu0 %v421, 18
      %v921 = vpop.permute.xlu0 %920
      %922 = vrot.lane.b32.xlu0 %v422, 18
      %v923 = vpop.permute.xlu0 %922
      %924 = vrot.lane.b32.xlu0 %v423, 18
      %v925 = vpop.permute.xlu0 %924
      %926 = vrot.lane.b32.xlu0 %v424, 18
      %v927 = vpop.permute.xlu0 %926
      %928 = vrot.lane.b32.xlu0 %v425, 18
      %v929 = vpop.permute.xlu0 %928
      %930 = vrot.lane.b32.xlu0 %v426, 18
      %v931 = vpop.permute.xlu0 %930
      %932 = vrot.lane.b32.xlu0 %v427, 18
      %v933 = vpop.permute.xlu0 %932
      %934 = vrot.lane.b32.xlu0 %v428, 18
      %v935 = vpop.permute.xlu0 %934
      %936 = vrot.lane.b32.xlu0 %v429, 18
      %v937 = vpop.permute.xlu0 %936
      %938 = vrot.lane.b32.xlu0 %v430, 18
      %v939 = vpop.permute.xlu0 %938
      %940 = vrot.lane.b32.xlu0 %v431, 18
      %v941 = vpop.permute.xlu0 %940
      %986 = vrot.lane.b32.xlu0 %v432, 21
      %v987 = vpop.permute.xlu0 %986
      %988 = vrot.lane.b32.xlu0 %v433, 21
      %v989 = vpop.permute.xlu0 %988
      %990 = vrot.lane.b32.xlu0 %v434, 21
      %v991 = vpop.permute.xlu0 %990
      %992 = vrot.lane.b32.xlu0 %v435, 21
      %v993 = vpop.permute.xlu0 %992
      %994 = vrot.lane.b32.xlu0 %v436, 21
      %v995 = vpop.permute.xlu0 %994
      %996 = vrot.lane.b32.xlu0 %v437, 21
      %v997 = vpop.permute.xlu0 %996
      %998 = vrot.lane.b32.xlu0 %v438, 21
      %v999 = vpop.permute.xlu0 %998
      %1000 = vrot.lane.b32.xlu0 %v439, 21
      %v1001 = vpop.permute.xlu0 %1000
      %1002 = vrot.lane.b32.xlu0 %v440, 21
      %v1003 = vpop.permute.xlu0 %1002
      %1004 = vrot.lane.b32.xlu0 %v441, 21
      %v1005 = vpop.permute.xlu0 %1004
      %1006 = vrot.lane.b32.xlu0 %v442, 21
      %v1007 = vpop.permute.xlu0 %1006
      %1008 = vrot.lane.b32.xlu0 %v443, 21
      %v1009 = vpop.permute.xlu0 %1008
      %1010 = vrot.lane.b32.xlu0 %v444, 21
      %v1011 = vpop.permute.xlu0 %1010
      %1012 = vrot.lane.b32.xlu0 %v445, 21
      %v1013 = vpop.permute.xlu0 %1012
      %1014 = vrot.lane.b32.xlu0 %v446, 21
      %v1015 = vpop.permute.xlu0 %1014
      %1016 = vrot.lane.b32.xlu0 %v447, 21
      %v1017 = vpop.permute.xlu0 %1016
      %1018 = vrot.lane.b32.xlu0 %v448, 21
      %v1019 = vpop.permute.xlu0 %1018
      %1020 = vrot.lane.b32.xlu0 %v449, 21
      %v1021 = vpop.permute.xlu0 %1020
      %1022 = vrot.lane.b32.xlu0 %v450, 21
      %v1023 = vpop.permute.xlu0 %1022
      %1024 = vrot.lane.b32.xlu0 %v451, 21
      %v1025 = vpop.permute.xlu0 %1024
      %1026 = vrot.lane.b32.xlu0 %v452, 21
      %v1027 = vpop.permute.xlu0 %1026
      %1028 = vrot.lane.b32.xlu0 %v453, 21
      %v1029 = vpop.permute.xlu0 %1028
      %1074 = vrot.lane.b32.xlu0 %v454, 24
      %v1075 = vpop.permute.xlu0 %1074
      %1076 = vrot.lane.b32.xlu0 %v455, 24
      %v1077 = vpop.permute.xlu0 %1076
      %1078 = vrot.lane.b32.xlu0 %v456, 24
      %v1079 = vpop.permute.xlu0 %1078
      %1080 = vrot.lane.b32.xlu0 %v457, 24
      %v1081 = vpop.permute.xlu0 %1080
      %1082 = vrot.lane.b32.xlu0 %v458, 24
      %v1083 = vpop.permute.xlu0 %1082
      %1084 = vrot.lane.b32.xlu0 %v459, 24
      %v1085 = vpop.permute.xlu0 %1084
      %1086 = vrot.lane.b32.xlu0 %v460, 24
      %v1087 = vpop.permute.xlu0 %1086
      %1088 = vrot.lane.b32.xlu0 %v461, 24
      %v1089 = vpop.permute.xlu0 %1088
      %1090 = vrot.lane.b32.xlu0 %v462, 24
      %v1091 = vpop.permute.xlu0 %1090
      %1092 = vrot.lane.b32.xlu0 %v463, 24
      %v1093 = vpop.permute.xlu0 %1092
      %1094 = vrot.lane.b32.xlu0 %v464, 24
      %v1095 = vpop.permute.xlu0 %1094
      %1096 = vrot.lane.b32.xlu0 %v465, 24
      %v1097 = vpop.permute.xlu0 %1096
      %1098 = vrot.lane.b32.xlu0 %v466, 24
      %v1099 = vpop.permute.xlu0 %1098
      %1100 = vrot.lane.b32.xlu0 %v467, 24
      %v1101 = vpop.permute.xlu0 %1100
      %1102 = vrot.lane.b32.xlu0 %v468, 24
      %v1103 = vpop.permute.xlu0 %1102
      %1104 = vrot.lane.b32.xlu0 %v469, 24
      %v1105 = vpop.permute.xlu0 %1104
      %1106 = vrot.lane.b32.xlu0 %v470, 24
      %v1107 = vpop.permute.xlu0 %1106
      %1108 = vrot.lane.b32.xlu0 %v471, 24
      %v1109 = vpop.permute.xlu0 %1108
      %1110 = vrot.lane.b32.xlu0 %v472, 24
      %v1111 = vpop.permute.xlu0 %1110
      %1112 = vrot.lane.b32.xlu0 %v473, 24
      %v1113 = vpop.permute.xlu0 %1112
      %1114 = vrot.lane.b32.xlu0 %v474, 24
      %v1115 = vpop.permute.xlu0 %1114
      %1116 = vrot.lane.b32.xlu0 %v475, 24
      %v1117 = vpop.permute.xlu0 %1116
      %vm1140 = vcmask 23552
      %v1141 = vsel %vm1140, %v318, %v499
      %v1142 = vsel %vm1140, %v319, %v501
      %v1143 = vsel %vm1140, %v320, %v503
      %v1144 = vsel %vm1140, %v321, %v505
      %v1145 = vsel %vm1140, %v322, %v507
      %v1146 = vsel %vm1140, %v323, %v509
      %v1147 = vsel %vm1140, %v324, %v511
      %v1148 = vsel %vm1140, %v325, %v513
      %v1149 = vsel %vm1140, %v326, %v515
      %v1150 = vsel %vm1140, %v327, %v517
      %v1151 = vsel %vm1140, %v328, %v519
      %v1152 = vsel %vm1140, %v329, %v521
      %v1153 = vsel %vm1140, %v330, %v523
      %v1154 = vsel %vm1140, %v331, %v525
      %v1155 = vsel %vm1140, %v332, %v527
      %v1156 = vsel %vm1140, %v333, %v529
      %v1157 = vsel %vm1140, %v334, %v531
      %v1158 = vsel %vm1140, %v335, %v533
      %v1159 = vsel %vm1140, %v336, %v535
      %v1160 = vsel %vm1140, %v337, %v537
      %v1161 = vsel %vm1140, %v338, %v539
      %v1162 = vsel %vm1140, %v339, %v541
      %vm1163 = vcmask 48128
      %v1164 = vsel %vm1163, %v1141, %v587
      %v1165 = vsel %vm1163, %v1142, %v589
      %v1166 = vsel %vm1163, %v1143, %v591
      %v1167 = vsel %vm1163, %v1144, %v593
      %v1168 = vsel %vm1163, %v1145, %v595
      %v1169 = vsel %vm1163, %v1146, %v597
      %v1170 = vsel %vm1163, %v1147, %v599
      %v1171 = vsel %vm1163, %v1148, %v601
      %v1172 = vsel %vm1163, %v1149, %v603
      %v1173 = vsel %vm1163, %v1150, %v605
      %v1174 = vsel %vm1163, %v1151, %v607
      %v1175 = vsel %vm1163, %v1152, %v609
      %v1176 = vsel %vm1163, %v1153, %v611
      %v1177 = vsel %vm1163, %v1154, %v613
      %v1178 = vsel %vm1163, %v1155, %v615
      %v1179 = vsel %vm1163, %v1156, %v617
      %v1180 = vsel %vm1163, %v1157, %v619
      %v1181 = vsel %vm1163, %v1158, %v621
      %v1182 = vsel %vm1163, %v1159, %v623
      %v1183 = vsel %vm1163, %v1160, %v625
      %v1184 = vsel %vm1163, %v1161, %v627
      %v1185 = vsel %vm1163, %v1162, %v629
      %vm1186 = vcmask 72704
      %v1187 = vsel %vm1186, %v1164, %v655
      %v1188 = vsel %vm1186, %v1165, %v657
      %v1189 = vsel %vm1186, %v1166, %v659
      %v1190 = vsel %vm1186, %v1167, %v661
      %v1191 = vsel %vm1186, %v1168, %v663
      %v1192 = vsel %vm1186, %v1169, %v665
      %v1193 = vsel %vm1186, %v1170, %v667
      %v1194 = vsel %vm1186, %v1171, %v669
      %v1195 = vsel %vm1186, %v1172, %v671
      %v1196 = vsel %vm1186, %v1173, %v673
      %v1197 = vsel %vm1186, %v1174, %v675
      %v1198 = vsel %vm1186, %v1175, %v677
      %v1199 = vsel %vm1186, %v1176, %v679
      %v1200 = vsel %vm1186, %v1177, %v681
      %v1201 = vsel %vm1186, %v1178, %v683
      %v1202 = vsel %vm1186, %v1179, %v685
      %v1203 = vsel %vm1186, %v1180, %v687
      %v1204 = vsel %vm1186, %v1181, %v689
      %v1205 = vsel %vm1186, %v1182, %v691
      %v1206 = vsel %vm1186, %v1183, %v693
      %v1207 = vsel %vm1186, %v1184, %v695
      %v1208 = vsel %vm1186, %v1185, %v697
      %vm1209 = vcmask 97280
      %v1210 = vsel %vm1209, %v1187, %v743
      %v1211 = vsel %vm1209, %v1188, %v745
      %v1212 = vsel %vm1209, %v1189, %v747
      %v1213 = vsel %vm1209, %v1190, %v749
      %v1214 = vsel %vm1209, %v1191, %v751
      %v1215 = vsel %vm1209, %v1192, %v753
      %v1216 = vsel %vm1209, %v1193, %v755
      %v1217 = vsel %vm1209, %v1194, %v757
      %v1218 = vsel %vm1209, %v1195, %v759
      %v1219 = vsel %vm1209, %v1196, %v761
      %v1220 = vsel %vm1209, %v1197, %v763
      %v1221 = vsel %vm1209, %v1198, %v765
      %v1222 = vsel %vm1209, %v1199, %v767
      %v1223 = vsel %vm1209, %v1200, %v769
      %v1224 = vsel %vm1209, %v1201, %v771
      %v1225 = vsel %vm1209, %v1202, %v773
      %v1226 = vsel %vm1209, %v1203, %v775
      %v1227 = vsel %vm1209, %v1204, %v777
      %v1228 = vsel %vm1209, %v1205, %v779
      %v1229 = vsel %vm1209, %v1206, %v781
      %v1230 = vsel %vm1209, %v1207, %v783
      %v1231 = vsel %vm1209, %v1208, %v785
      %vm1232 = vcmask 121856
      %v1233 = vsel %vm1232, %v1210, %v831
      %v1234 = vsel %vm1232, %v1211, %v833
      %v1235 = vsel %vm1232, %v1212, %v835
      %v1236 = vsel %vm1232, %v1213, %v837
      %v1237 = vsel %vm1232, %v1214, %v839
      %v1238 = vsel %vm1232, %v1215, %v841
      %v1239 = vsel %vm1232, %v1216, %v843
      %v1240 = vsel %vm1232, %v1217, %v845
      %v1241 = vsel %vm1232, %v1218, %v847
      %v1242 = vsel %vm1232, %v1219, %v849
      %v1243 = vsel %vm1232, %v1220, %v851
      %v1244 = vsel %vm1232, %v1221, %v853
      %v1245 = vsel %vm1232, %v1222, %v855
      %v1246 = vsel %vm1232, %v1223, %v857
      %v1247 = vsel %vm1232, %v1224, %v859
      %v1248 = vsel %vm1232, %v1225, %v861
      %v1249 = vsel %vm1232, %v1226, %v863
      %v1250 = vsel %vm1232, %v1227, %v865
      %v1251 = vsel %vm1232, %v1228, %v867
      %v1252 = vsel %vm1232, %v1229, %v869
      %v1253 = vsel %vm1232, %v1230, %v871
      %v1254 = vsel %vm1232, %v1231, %v873
      %vm1255 = vcmask 146432
      %v1256 = vsel %vm1255, %v1233, %v899
      %v1257 = vsel %vm1255, %v1234, %v901
      %v1258 = vsel %vm1255, %v1235, %v903
      %v1259 = vsel %vm1255, %v1236, %v905
      %v1260 = vsel %vm1255, %v1237, %v907
      %v1261 = vsel %vm1255, %v1238, %v909
      %v1262 = vsel %vm1255, %v1239, %v911
      %v1263 = vsel %vm1255, %v1240, %v913
      %v1264 = vsel %vm1255, %v1241, %v915
      %v1265 = vsel %vm1255, %v1242, %v917
      %v1266 = vsel %vm1255, %v1243, %v919
      %v1267 = vsel %vm1255, %v1244, %v921
      %v1268 = vsel %vm1255, %v1245, %v923
      %v1269 = vsel %vm1255, %v1246, %v925
      %v1270 = vsel %vm1255, %v1247, %v927
      %v1271 = vsel %vm1255, %v1248, %v929
      %v1272 = vsel %vm1255, %v1249, %v931
      %v1273 = vsel %vm1255, %v1250, %v933
      %v1274 = vsel %vm1255, %v1251, %v935
      %v1275 = vsel %vm1255, %v1252, %v937
      %v1276 = vsel %vm1255, %v1253, %v939
      %v1277 = vsel %vm1255, %v1254, %v941
      %vm1278 = vcmask 171008
      %v1279 = vsel %vm1278, %v1256, %v987
      %v1280 = vsel %vm1278, %v1257, %v989
      %v1281 = vsel %vm1278, %v1258, %v991
      %v1282 = vsel %vm1278, %v1259, %v993
      %v1283 = vsel %vm1278, %v1260, %v995
      %v1284 = vsel %vm1278, %v1261, %v997
      %v1285 = vsel %vm1278, %v1262, %v999
      %v1286 = vsel %vm1278, %v1263, %v1001
      %v1287 = vsel %vm1278, %v1264, %v1003
      %v1288 = vsel %vm1278, %v1265, %v1005
      %v1289 = vsel %vm1278, %v1266, %v1007
      %v1290 = vsel %vm1278, %v1267, %v1009
      %v1291 = vsel %vm1278, %v1268, %v1011
      %v1292 = vsel %vm1278, %v1269, %v1013
      %v1293 = vsel %vm1278, %v1270, %v1015
      %v1294 = vsel %vm1278, %v1271, %v1017
      %v1295 = vsel %vm1278, %v1272, %v1019
      %v1296 = vsel %vm1278, %v1273, %v1021
      %v1297 = vsel %vm1278, %v1274, %v1023
      %v1298 = vsel %vm1278, %v1275, %v1025
      %v1299 = vsel %vm1278, %v1276, %v1027
      %v1300 = vsel %vm1278, %v1277, %v1029
      %vm1301 = vcmask 195584
      %v1302 = vsel %vm1301, %v1279, %v1075
      %v1303 = vsel %vm1301, %v1280, %v1077
      %v1304 = vsel %vm1301, %v1281, %v1079
      %v1305 = vsel %vm1301, %v1282, %v1081
      %v1306 = vsel %vm1301, %v1283, %v1083
      %v1307 = vsel %vm1301, %v1284, %v1085
      %v1308 = vsel %vm1301, %v1285, %v1087
      %v1309 = vsel %vm1301, %v1286, %v1089
      %v1310 = vsel %vm1301, %v1287, %v1091
      %v1311 = vsel %vm1301, %v1288, %v1093
      %v1312 = vsel %vm1301, %v1289, %v1095
      %v1313 = vsel %vm1301, %v1290, %v1097
      %v1314 = vsel %vm1301, %v1291, %v1099
      %v1315 = vsel %vm1301, %v1292, %v1101
      %v1316 = vsel %vm1301, %v1293, %v1103
      %v1317 = vsel %vm1301, %v1294, %v1105
      %v1318 = vsel %vm1301, %v1295, %v1107
      %v1319 = vsel %vm1301, %v1296, %v1109
      %v1320 = vsel %vm1301, %v1297, %v1111
      %v1321 = vsel %vm1301, %v1298, %v1113
      %v1322 = vsel %vm1301, %v1299, %v1115
      %v1323 = vsel %vm1301, %v1300, %v1117
      %v1324 = vpack.c.bf16 %v1303, %v1302
      %v1325 = vpack.c.bf16 %v1305, %v1304
      %v1326 = vpack.c.bf16 %v1307, %v1306
      %v1327 = vpack.c.bf16 %v1309, %v1308
      %v1328 = vpack.c.bf16 %v1311, %v1310
      %v1329 = vpack.c.bf16 %v1313, %v1312
      %v1330 = vpack.c.bf16 %v1315, %v1314
      %v1331 = vpack.c.bf16 %v1317, %v1316
      %v1332 = vpack.c.bf16 %v1319, %v1318
      %v1333 = vpack.c.bf16 %v1321, %v1320
      %v1334 = vpack.c.bf16 %v1323, %v1322
      %v1335 = vld [vmem:[%s2] sm:$0xf]
      %v1336 = vld [vmem:[%s2 + $0x4] sm:$0xf]
      %v1337 = vld [vmem:[%s2 + $0x8] sm:$0xf]
      %v1338 = vld [vmem:[%s2 + $0xc] sm:$0x3]
      %v1339 = vld [vmem:[%s3] sm:$0x1]
      %v1341 = vlaneseq
      %v1342 = vshrl.u32 %v1341, 7
      %v1343 = vsub.s32 0, %v1342
      %v1344 = vrot.slane %v1339, %v1343
      %v1350 = vunpack.c.l.b16 %v1335
      %v1351 = vunpack.c.l.b16 %v1336
      %v1352 = vunpack.c.l.b16 %v1337
      %v1353 = vunpack.c.l.b16 %v1338
      %v1354 = vpack.c.b16 %v1351, %v1350
      %v1355 = vpack.c.b16 %v1353, %v1352
      %vm1357 = vcmask 220160
      %v1359 = vsel %vm1357, %v1324, 0
      %v1362 = vsel %vm1357, %v1325, 0
      %v1365 = vsel %vm1357, %v1326, 0
      %v1368 = vsel %vm1357, %v1327, 0
      %v1371 = vsel %vm1357, %v1328, 0
      %v1374 = vsel %vm1357, %v1329, 0
      %v1377 = vsel %vm1357, %v1330, 0
      %v1380 = vsel %vm1357, %v1331, 0
      %v1383 = vsel %vm1357, %v1332, 0
      %v1386 = vsel %vm1357, %v1333, 0
      %v1389 = vsel %vm1357, %v1334, 0
      %vm1391 = vcmask 1044480
      %vm1392 = vcmask 1045504
      %v1393 = vsel %vm1391, 4294967295, 65535
      %v1394 = vsel %vm1392, %v1393, 0
      %v1396 = vand.u32 %v1355, %v1394
      %1398 = vmatprep.subr.bf16.mxu0 0
      %1399 = vmatpush1.bf16.msra.mxu0 %v1354
      %1400 = vmatprep.subr.bf16.mxu0 0
      %1401 = vmatpush1.bf16.msra.mxu0 %v1396
      %1402 = vmatprep.subr.bf16.mxu0 0
      %1403 = vmatpush1.bf16.msra.mxu0 0
      %1404 = vmatprep.subr.bf16.mxu0 0
      %1405 = vmatpush1.bf16.msra.mxu0 0
      %1406 = vmatprep.subr.bf16.mxu0 0
      %1407 = vmatpush1.bf16.msra.mxu0 0
      %1408 = vmatprep.subr.bf16.mxu0 0
      %1409 = vmatpush1.bf16.msra.mxu0 0
      %1410 = vmatprep.subr.bf16.mxu0 0
      %1411 = vmatpush1.bf16.msra.mxu0 0
      %1412 = vmatprep.subr.bf16.mxu0 0
      %1413 = vmatpush1.bf16.msra.mxu0 0
      %1414 = vmatprep.subr.bf16.mxu0 0
      %1415 = vmatpush1.bf16.msra.mxu0 0
      %1416 = vmatprep.subr.bf16.mxu0 0
      %1417 = vmatpush1.bf16.msra.mxu0 0
      %1418 = vmatprep.subr.bf16.mxu0 0
      %1419 = vmatpush1.bf16.msra.mxu0 0
      %1420 = vmatprep.subr.bf16.mxu0 0
      %1421 = vmatpush1.bf16.msra.mxu0 0
      %1422 = vmatprep.subr.bf16.mxu0 0
      %1423 = vmatpush1.bf16.msra.mxu0 0
      %1424 = vmatprep.subr.bf16.mxu0 0
      %1425 = vmatpush1.bf16.msra.mxu0 0
      %1426 = vmatprep.subr.bf16.mxu0 0
      %1427 = vmatpush1.bf16.msra.mxu0 0
      %1428 = vmatprep.subr.bf16.mxu0 0
      %1429 = vmatpush1.bf16.msra.mxu0 0
      %1430 = vmatprep.mubr.bf16.mxu0 0
      %1431 = vmatmul.mubr.bf16.gmra.mrb[0].mxu0 %v1359
      %v1432 = vpop.f32.mrb[0].mxu0
      %v1433 = vadd.f32 %v1344, %v1432
      %v1434 = vpop.f32.mrb[0].mxu0
      %v1435 = vpop.f32.mrb[0].mxu0
      %v1436 = vadd.f32 %v1344, %v1435
      %v1437 = vpop.f32.mrb[0].mxu0
      %1438 = vmatprep.mubr.bf16.mxu0 0
      %1439 = vmatmul.mubr.bf16.gmra.mrb[0].mxu0 %v1362
      %v1440 = vpop.f32.mrb[0].mxu0
      %v1441 = vadd.f32 %v1344, %v1440
      %v1442 = vpop.f32.mrb[0].mxu0
      %v1443 = vpop.f32.mrb[0].mxu0
      %v1444 = vadd.f32 %v1344, %v1443
      %v1445 = vpop.f32.mrb[0].mxu0
      %1446 = vmatprep.mubr.bf16.mxu0 0
      %1447 = vmatmul.mubr.bf16.gmra.mrb[0].mxu0 %v1365
      %v1448 = vpop.f32.mrb[0].mxu0
      %v1449 = vadd.f32 %v1344, %v1448
      %v1450 = vpop.f32.mrb[0].mxu0
      %v1451 = vpop.f32.mrb[0].mxu0
      %v1452 = vadd.f32 %v1344, %v1451
      %v1453 = vpop.f32.mrb[0].mxu0
      %1454 = vmatprep.mubr.bf16.mxu0 0
      %1455 = vmatmul.mubr.bf16.gmra.mrb[0].mxu0 %v1368
      %v1456 = vpop.f32.mrb[0].mxu0
      %v1457 = vadd.f32 %v1344, %v1456
      %v1458 = vpop.f32.mrb[0].mxu0
      %v1459 = vpop.f32.mrb[0].mxu0
      %v1460 = vadd.f32 %v1344, %v1459
      %v1461 = vpop.f32.mrb[0].mxu0
      %1462 = vmatprep.mubr.bf16.mxu0 0
      %1463 = vmatmul.mubr.bf16.gmra.mrb[0].mxu0 %v1371
      %v1464 = vpop.f32.mrb[0].mxu0
      %v1465 = vadd.f32 %v1344, %v1464
      %v1466 = vpop.f32.mrb[0].mxu0
      %v1467 = vpop.f32.mrb[0].mxu0
      %v1468 = vadd.f32 %v1344, %v1467
      %v1469 = vpop.f32.mrb[0].mxu0
      %1470 = vmatprep.mubr.bf16.mxu0 0
      %1471 = vmatmul.mubr.bf16.gmra.mrb[0].mxu0 %v1374
      %v1472 = vpop.f32.mrb[0].mxu0
      %v1473 = vadd.f32 %v1344, %v1472
      %v1474 = vpop.f32.mrb[0].mxu0
      %v1475 = vpop.f32.mrb[0].mxu0
      %v1476 = vadd.f32 %v1344, %v1475
      %v1477 = vpop.f32.mrb[0].mxu0
      %1478 = vmatprep.mubr.bf16.mxu0 0
      %1479 = vmatmul.mubr.bf16.gmra.mrb[0].mxu0 %v1377
      %v1480 = vpop.f32.mrb[0].mxu0
      %v1481 = vadd.f32 %v1344, %v1480
      %v1482 = vpop.f32.mrb[0].mxu0
      %v1483 = vpop.f32.mrb[0].mxu0
      %v1484 = vadd.f32 %v1344, %v1483
      %v1485 = vpop.f32.mrb[0].mxu0
      %1486 = vmatprep.mubr.bf16.mxu0 0
      %1487 = vmatmul.mubr.bf16.gmra.mrb[0].mxu0 %v1380
      %v1488 = vpop.f32.mrb[0].mxu0
      %v1489 = vadd.f32 %v1344, %v1488
      %v1490 = vpop.f32.mrb[0].mxu0
      %v1491 = vpop.f32.mrb[0].mxu0
      %v1492 = vadd.f32 %v1344, %v1491
      %v1493 = vpop.f32.mrb[0].mxu0
      %1494 = vmatprep.mubr.bf16.mxu0 0
      %1495 = vmatmul.mubr.bf16.gmra.mrb[0].mxu0 %v1383
      %v1496 = vpop.f32.mrb[0].mxu0
      %v1497 = vadd.f32 %v1344, %v1496
      %v1498 = vpop.f32.mrb[0].mxu0
      %v1499 = vpop.f32.mrb[0].mxu0
      %v1500 = vadd.f32 %v1344, %v1499
      %v1501 = vpop.f32.mrb[0].mxu0
      %1502 = vmatprep.mubr.bf16.mxu0 0
      %1503 = vmatmul.mubr.bf16.gmra.mrb[0].mxu0 %v1386
      %v1504 = vpop.f32.mrb[0].mxu0
      %v1505 = vadd.f32 %v1344, %v1504
      %v1506 = vpop.f32.mrb[0].mxu0
      %v1507 = vpop.f32.mrb[0].mxu0
      %v1508 = vadd.f32 %v1344, %v1507
      %v1509 = vpop.f32.mrb[0].mxu0
      %1510 = vmatprep.mubr.bf16.mxu0 0
      %1511 = vmatmul.mubr.bf16.gmra.mrb[0].mxu0 %v1389
      %v1512 = vpop.f32.mrb[0].mxu0
      %v1513 = vadd.f32 %v1344, %v1512
      %v1514 = vpop.f32.mrb[0].mxu0
      %v1515 = vpop.f32.mrb[0].mxu0
      %v1516 = vadd.f32 %v1344, %v1515
      %v1517 = vpop.f32.mrb[0].mxu0
      %1518 = vdwg.mxu0
      %v1519 = vxor.u32 %v1433, 2147483648
      %v1520 = vxor.u32 %v1436, 2147483648
      %v1521 = vxor.u32 %v1441, 2147483648
      %v1522 = vxor.u32 %v1444, 2147483648
      %v1523 = vxor.u32 %v1449, 2147483648
      %v1524 = vxor.u32 %v1452, 2147483648
      %v1525 = vxor.u32 %v1457, 2147483648
      %v1526 = vxor.u32 %v1460, 2147483648
      %v1527 = vxor.u32 %v1465, 2147483648
      %v1528 = vxor.u32 %v1468, 2147483648
      %v1529 = vxor.u32 %v1473, 2147483648
      %v1530 = vxor.u32 %v1476, 2147483648
      %v1531 = vxor.u32 %v1481, 2147483648
      %v1532 = vxor.u32 %v1484, 2147483648
      %v1533 = vxor.u32 %v1489, 2147483648
      %v1534 = vxor.u32 %v1492, 2147483648
      %v1535 = vxor.u32 %v1497, 2147483648
      %v1536 = vxor.u32 %v1500, 2147483648
      %v1537 = vxor.u32 %v1505, 2147483648
      %v1538 = vxor.u32 %v1508, 2147483648
      %v1539 = vxor.u32 %v1513, 2147483648
      %v1540 = vxor.u32 %v1516, 2147483648
      %v1541 = vmul.f32 %v1519, 1.442695
      %v1542 = vpow.pop %v1541
      %v1543 = vmul.f32 %v1520, 1.442695
      %v1544 = vpow.pop %v1543
      %v1545 = vmul.f32 %v1521, 1.442695
      %v1546 = vpow.pop %v1545
      %v1547 = vmul.f32 %v1522, 1.442695
      %v1548 = vpow.pop %v1547
      %v1549 = vmul.f32 %v1523, 1.442695
      %v1550 = vpow.pop %v1549
      %v1551 = vmul.f32 %v1524, 1.442695
      %v1552 = vpow.pop %v1551
      %v1553 = vmul.f32 %v1525, 1.442695
      %v1554 = vpow.pop %v1553
      %v1555 = vmul.f32 %v1526, 1.442695
      %v1556 = vpow.pop %v1555
      %v1557 = vmul.f32 %v1527, 1.442695
      %v1558 = vpow.pop %v1557
      %v1559 = vmul.f32 %v1528, 1.442695
      %v1560 = vpow.pop %v1559
      %v1561 = vmul.f32 %v1529, 1.442695
      %v1562 = vpow.pop %v1561
      %v1563 = vmul.f32 %v1530, 1.442695
      %v1564 = vpow.pop %v1563
      %v1565 = vmul.f32 %v1531, 1.442695
      %v1566 = vpow.pop %v1565
      %v1567 = vmul.f32 %v1532, 1.442695
      %v1568 = vpow.pop %v1567
      %v1569 = vmul.f32 %v1533, 1.442695
      %v1570 = vpow.pop %v1569
      %v1571 = vmul.f32 %v1534, 1.442695
      %v1572 = vpow.pop %v1571
      %v1573 = vmul.f32 %v1535, 1.442695
      %v1574 = vpow.pop %v1573
      %v1575 = vmul.f32 %v1536, 1.442695
      %v1576 = vpow.pop %v1575
      %v1577 = vmul.f32 %v1537, 1.442695
      %v1578 = vpow.pop %v1577
      %v1579 = vmul.f32 %v1538, 1.442695
      %v1580 = vpow.pop %v1579
      %v1581 = vmul.f32 %v1539, 1.442695
      %v1582 = vpow.pop %v1581
      %v1583 = vmul.f32 %v1540, 1.442695
      %v1584 = vpow.pop %v1583
      %v1585 = vadd.f32 %v1542, 1.0
      %v1586 = vadd.f32 %v1544, 1.0
      %v1587 = vadd.f32 %v1546, 1.0
      %v1588 = vadd.f32 %v1548, 1.0
      %v1589 = vadd.f32 %v1550, 1.0
      %v1590 = vadd.f32 %v1552, 1.0
      %v1591 = vadd.f32 %v1554, 1.0
      %v1592 = vadd.f32 %v1556, 1.0
      %v1593 = vadd.f32 %v1558, 1.0
      %v1594 = vadd.f32 %v1560, 1.0
      %v1595 = vadd.f32 %v1562, 1.0
      %v1596 = vadd.f32 %v1564, 1.0
      %v1597 = vadd.f32 %v1566, 1.0
      %v1598 = vadd.f32 %v1568, 1.0
      %v1599 = vadd.f32 %v1570, 1.0
      %v1600 = vadd.f32 %v1572, 1.0
      %v1601 = vadd.f32 %v1574, 1.0
      %v1602 = vadd.f32 %v1576, 1.0
      %v1603 = vadd.f32 %v1578, 1.0
      %v1604 = vadd.f32 %v1580, 1.0
      %v1605 = vadd.f32 %v1582, 1.0
      %v1606 = vadd.f32 %v1584, 1.0
      %v1607 = vrcp.pop %v1585
      %v1608 = vmul.f32 1.0, %v1607
      %v1609 = vrcp.pop %v1586
      %v1610 = vmul.f32 1.0, %v1609
      %v1611 = vrcp.pop %v1587
      %v1612 = vmul.f32 1.0, %v1611
      %v1613 = vrcp.pop %v1588
      %v1614 = vmul.f32 1.0, %v1613
      %v1615 = vrcp.pop %v1589
      %v1616 = vmul.f32 1.0, %v1615
      %v1617 = vrcp.pop %v1590
      %v1618 = vmul.f32 1.0, %v1617
      %v1619 = vrcp.pop %v1591
      %v1620 = vmul.f32 1.0, %v1619
      %v1621 = vrcp.pop %v1592
      %v1622 = vmul.f32 1.0, %v1621
      %v1623 = vrcp.pop %v1593
      %v1624 = vmul.f32 1.0, %v1623
      %v1625 = vrcp.pop %v1594
      %v1626 = vmul.f32 1.0, %v1625
      %v1627 = vrcp.pop %v1595
      %v1628 = vmul.f32 1.0, %v1627
      %v1629 = vrcp.pop %v1596
      %v1630 = vmul.f32 1.0, %v1629
      %v1631 = vrcp.pop %v1597
      %v1632 = vmul.f32 1.0, %v1631
      %v1633 = vrcp.pop %v1598
      %v1634 = vmul.f32 1.0, %v1633
      %v1635 = vrcp.pop %v1599
      %v1636 = vmul.f32 1.0, %v1635
      %v1637 = vrcp.pop %v1600
      %v1638 = vmul.f32 1.0, %v1637
      %v1639 = vrcp.pop %v1601
      %v1640 = vmul.f32 1.0, %v1639
      %v1641 = vrcp.pop %v1602
      %v1642 = vmul.f32 1.0, %v1641
      %v1643 = vrcp.pop %v1603
      %v1644 = vmul.f32 1.0, %v1643
      %v1645 = vrcp.pop %v1604
      %v1646 = vmul.f32 1.0, %v1645
      %v1647 = vrcp.pop %v1605
      %v1648 = vmul.f32 1.0, %v1647
      %v1649 = vrcp.pop %v1606
      %v1650 = vmul.f32 1.0, %v1649
      %v1651 = vmul.f32 %v1433, %v1608
      %v1652 = vmul.f32 %v1436, %v1610
      %v1653 = vmul.f32 %v1441, %v1612
      %v1654 = vmul.f32 %v1444, %v1614
      %v1655 = vmul.f32 %v1449, %v1616
      %v1656 = vmul.f32 %v1452, %v1618
      %v1657 = vmul.f32 %v1457, %v1620
      %v1658 = vmul.f32 %v1460, %v1622
      %v1659 = vmul.f32 %v1465, %v1624
      %v1660 = vmul.f32 %v1468, %v1626
      %v1661 = vmul.f32 %v1473, %v1628
      %v1662 = vmul.f32 %v1476, %v1630
      %v1663 = vmul.f32 %v1481, %v1632
      %v1664 = vmul.f32 %v1484, %v1634
      %v1665 = vmul.f32 %v1489, %v1636
      %v1666 = vmul.f32 %v1492, %v1638
      %v1667 = vmul.f32 %v1497, %v1640
      %v1668 = vmul.f32 %v1500, %v1642
      %v1669 = vmul.f32 %v1505, %v1644
      %v1670 = vmul.f32 %v1508, %v1646
      %v1671 = vmul.f32 %v1513, %v1648
      %v1672 = vmul.f32 %v1516, %v1650
      %v1673 = vpack.c.bf16 %v1652, %v1651
      %v1674 = vpack.c.bf16 %v1654, %v1653
      %v1675 = vpack.c.bf16 %v1656, %v1655
      %v1676 = vpack.c.bf16 %v1658, %v1657
      %v1677 = vpack.c.bf16 %v1660, %v1659
      %v1678 = vpack.c.bf16 %v1662, %v1661
      %v1679 = vpack.c.bf16 %v1664, %v1663
      %v1680 = vpack.c.bf16 %v1666, %v1665
      %v1681 = vpack.c.bf16 %v1668, %v1667
      %v1682 = vpack.c.bf16 %v1670, %v1669
      %v1683 = vpack.c.bf16 %v1672, %v1671
      %v1684 = vunpack.c.l.bf16 %v1673
      %v1685 = vunpack.c.h.bf16 %v1673
      %v1686 = vunpack.c.l.bf16 %v1674
      %v1687 = vunpack.c.h.bf16 %v1674
      %v1688 = vunpack.c.l.bf16 %v1675
      %v1689 = vunpack.c.h.bf16 %v1675
      %v1690 = vunpack.c.l.bf16 %v1676
      %v1691 = vunpack.c.h.bf16 %v1676
      %v1692 = vunpack.c.l.bf16 %v1677
      %v1693 = vunpack.c.h.bf16 %v1677
      %v1694 = vunpack.c.l.bf16 %v1678
      %v1695 = vunpack.c.h.bf16 %v1678
      %v1696 = vunpack.c.l.bf16 %v1679
      %v1697 = vunpack.c.h.bf16 %v1679
      %v1698 = vunpack.c.l.bf16 %v1680
      %v1699 = vunpack.c.h.bf16 %v1680
      %v1700 = vunpack.c.l.bf16 %v1681
      %v1701 = vunpack.c.h.bf16 %v1681
      %v1702 = vunpack.c.l.bf16 %v1682
      %v1703 = vunpack.c.h.bf16 %v1682
      %v1704 = vunpack.c.l.bf16 %v1683
      %v1705 = vunpack.c.h.bf16 %v1683
      %v1706 = vmul.f32 %v1684, %v1684
      %v1707 = vmul.f32 %v1685, %v1685
      %v1708 = vmul.f32 %v1686, %v1686
      %v1709 = vmul.f32 %v1687, %v1687
      %v1710 = vmul.f32 %v1688, %v1688
      %v1711 = vmul.f32 %v1689, %v1689
      %v1712 = vmul.f32 %v1690, %v1690
      %v1713 = vmul.f32 %v1691, %v1691
      %v1714 = vmul.f32 %v1692, %v1692
      %v1715 = vmul.f32 %v1693, %v1693
      %v1716 = vmul.f32 %v1694, %v1694
      %v1717 = vmul.f32 %v1695, %v1695
      %v1718 = vmul.f32 %v1696, %v1696
      %v1719 = vmul.f32 %v1697, %v1697
      %v1720 = vmul.f32 %v1698, %v1698
      %v1721 = vmul.f32 %v1699, %v1699
      %v1722 = vmul.f32 %v1700, %v1700
      %v1723 = vmul.f32 %v1701, %v1701
      %v1724 = vmul.f32 %v1702, %v1702
      %v1725 = vmul.f32 %v1703, %v1703
      %v1726 = vmul.f32 %v1704, %v1704
      %v1727 = vmul.f32 %v1705, %v1705
      %vm1728 = vcmask 261120
      %v1729 = vsel %vm1728, %v1706, 0.0
      %1730 = vadd.xlane.f32.xlu0 %v1729
      %v1731 = vpop.xlane.xlu0 %1730
      %v1732 = vsel %vm1728, %v1707, 0.0
      %1733 = vadd.xlane.f32.xlu0 %v1732
      %v1734 = vpop.xlane.xlu0 %1733
      %v1735 = vsel %vm1728, %v1708, 0.0
      %1736 = vadd.xlane.f32.xlu0 %v1735
      %v1737 = vpop.xlane.xlu0 %1736
      %v1738 = vsel %vm1728, %v1709, 0.0
      %1739 = vadd.xlane.f32.xlu0 %v1738
      %v1740 = vpop.xlane.xlu0 %1739
      %v1741 = vsel %vm1728, %v1710, 0.0
      %1742 = vadd.xlane.f32.xlu0 %v1741
      %v1743 = vpop.xlane.xlu0 %1742
      %v1744 = vsel %vm1728, %v1711, 0.0
      %1745 = vadd.xlane.f32.xlu0 %v1744
      %v1746 = vpop.xlane.xlu0 %1745
      %v1747 = vsel %vm1728, %v1712, 0.0
      %1748 = vadd.xlane.f32.xlu0 %v1747
      %v1749 = vpop.xlane.xlu0 %1748
      %v1750 = vsel %vm1728, %v1713, 0.0
      %1751 = vadd.xlane.f32.xlu0 %v1750
      %v1752 = vpop.xlane.xlu0 %1751
      %v1753 = vsel %vm1728, %v1714, 0.0
      %1754 = vadd.xlane.f32.xlu0 %v1753
      %v1755 = vpop.xlane.xlu0 %1754
      %v1756 = vsel %vm1728, %v1715, 0.0
      %1757 = vadd.xlane.f32.xlu0 %v1756
      %v1758 = vpop.xlane.xlu0 %1757
      %v1759 = vsel %vm1728, %v1716, 0.0
      %1760 = vadd.xlane.f32.xlu0 %v1759
      %v1761 = vpop.xlane.xlu0 %1760
      %v1762 = vsel %vm1728, %v1717, 0.0
      %1763 = vadd.xlane.f32.xlu0 %v1762
      %v1764 = vpop.xlane.xlu0 %1763
      %v1765 = vsel %vm1728, %v1718, 0.0
      %1766 = vadd.xlane.f32.xlu0 %v1765
      %v1767 = vpop.xlane.xlu0 %1766
      %v1768 = vsel %vm1728, %v1719, 0.0
      %1769 = vadd.xlane.f32.xlu0 %v1768
      %v1770 = vpop.xlane.xlu0 %1769
      %v1771 = vsel %vm1728, %v1720, 0.0
      %1772 = vadd.xlane.f32.xlu0 %v1771
      %v1773 = vpop.xlane.xlu0 %1772
      %v1774 = vsel %vm1728, %v1721, 0.0
      %1775 = vadd.xlane.f32.xlu0 %v1774
      %v1776 = vpop.xlane.xlu0 %1775
      %v1777 = vsel %vm1728, %v1722, 0.0
      %1778 = vadd.xlane.f32.xlu0 %v1777
      %v1779 = vpop.xlane.xlu0 %1778
      %v1780 = vsel %vm1728, %v1723, 0.0
      %1781 = vadd.xlane.f32.xlu0 %v1780
      %v1782 = vpop.xlane.xlu0 %1781
      %v1783 = vsel %vm1728, %v1724, 0.0
      %1784 = vadd.xlane.f32.xlu0 %v1783
      %v1785 = vpop.xlane.xlu0 %1784
      %v1786 = vsel %vm1728, %v1725, 0.0
      %1787 = vadd.xlane.f32.xlu0 %v1786
      %v1788 = vpop.xlane.xlu0 %1787
      %v1789 = vsel %vm1728, %v1726, 0.0
      %1790 = vadd.xlane.f32.xlu0 %v1789
      %v1791 = vpop.xlane.xlu0 %1790
      %v1792 = vsel %vm1728, %v1727, 0.0
      %1793 = vadd.xlane.f32.xlu0 %v1792
      %v1794 = vpop.xlane.xlu0 %1793
      %v1795 = vmax.f32 %v1731, 1e-24
      %v1796 = vmax.f32 %v1734, 1e-24
      %v1797 = vmax.f32 %v1737, 1e-24
      %v1798 = vmax.f32 %v1740, 1e-24
      %v1799 = vmax.f32 %v1743, 1e-24
      %v1800 = vmax.f32 %v1746, 1e-24
      %v1801 = vmax.f32 %v1749, 1e-24
      %v1802 = vmax.f32 %v1752, 1e-24
      %v1803 = vmax.f32 %v1755, 1e-24
      %v1804 = vmax.f32 %v1758, 1e-24
      %v1805 = vmax.f32 %v1761, 1e-24
      %v1806 = vmax.f32 %v1764, 1e-24
      %v1807 = vmax.f32 %v1767, 1e-24
      %v1808 = vmax.f32 %v1770, 1e-24
      %v1809 = vmax.f32 %v1773, 1e-24
      %v1810 = vmax.f32 %v1776, 1e-24
      %v1811 = vmax.f32 %v1779, 1e-24
      %v1812 = vmax.f32 %v1782, 1e-24
      %v1813 = vmax.f32 %v1785, 1e-24
      %v1814 = vmax.f32 %v1788, 1e-24
      %v1815 = vmax.f32 %v1791, 1e-24
      %v1816 = vmax.f32 %v1794, 1e-24
      %v1817 = vrsqrt.pop %v1795
      %v1818 = vrsqrt.pop %v1796
      %v1819 = vrsqrt.pop %v1797
      %v1820 = vrsqrt.pop %v1798
      %v1821 = vrsqrt.pop %v1799
      %v1822 = vrsqrt.pop %v1800
      %v1823 = vrsqrt.pop %v1801
      %v1824 = vrsqrt.pop %v1802
      %v1825 = vrsqrt.pop %v1803
      %v1826 = vrsqrt.pop %v1804
      %v1827 = vrsqrt.pop %v1805
      %v1828 = vrsqrt.pop %v1806
      %v1829 = vrsqrt.pop %v1807
      %v1830 = vrsqrt.pop %v1808
      %v1831 = vrsqrt.pop %v1809
      %v1832 = vrsqrt.pop %v1810
      %v1833 = vrsqrt.pop %v1811
      %v1834 = vrsqrt.pop %v1812
      %v1835 = vrsqrt.pop %v1813
      %v1836 = vrsqrt.pop %v1814
      %v1837 = vrsqrt.pop %v1815
      %v1838 = vrsqrt.pop %v1816
      %v1839 = vld [vmem:[%s4] sm:$0xf]
      %v1840 = vld [vmem:[%s4 + $0x4] sm:$0xf]
      %v1841 = vld [vmem:[%s4 + $0x8] sm:$0xf]
      %v1842 = vld [vmem:[%s4 + $0xc] sm:$0xf]
      %v1847 = vunpack.c.l.b16 %v1839
      %v1848 = vunpack.c.l.b16 %v1840
      %v1849 = vunpack.c.l.b16 %v1841
      %v1850 = vunpack.c.l.b16 %v1842
      %v1851 = vpack.c.b16 %v1848, %v1847
      %v1852 = vpack.c.b16 %v1850, %v1849
      %v1856 = vsel %vm1728, %v1673, 0
      %v1859 = vsel %vm1728, %v1674, 0
      %v1862 = vsel %vm1728, %v1675, 0
      %v1865 = vsel %vm1728, %v1676, 0
      %v1868 = vsel %vm1728, %v1677, 0
      %v1871 = vsel %vm1728, %v1678, 0
      %v1874 = vsel %vm1728, %v1679, 0
      %v1877 = vsel %vm1728, %v1680, 0
      %v1880 = vsel %vm1728, %v1681, 0
      %v1883 = vsel %vm1728, %v1682, 0
      %v1886 = vsel %vm1728, %v1683, 0
      %1888 = vmatprep.subr.bf16.mxu0 0
      %1889 = vmatpush1.bf16.msra.mxu0 %v1851
      %1890 = vmatprep.subr.bf16.mxu0 0
      %1891 = vmatpush1.bf16.msra.mxu0 %v1852
      %1892 = vmatprep.subr.bf16.mxu0 0
      %1893 = vmatpush1.bf16.msra.mxu0 0
      %1894 = vmatprep.subr.bf16.mxu0 0
      %1895 = vmatpush1.bf16.msra.mxu0 0
      %1896 = vmatprep.subr.bf16.mxu0 0
      %1897 = vmatpush1.bf16.msra.mxu0 0
      %1898 = vmatprep.subr.bf16.mxu0 0
      %1899 = vmatpush1.bf16.msra.mxu0 0
      %1900 = vmatprep.subr.bf16.mxu0 0
      %1901 = vmatpush1.bf16.msra.mxu0 0
      %1902 = vmatprep.subr.bf16.mxu0 0
      %1903 = vmatpush1.bf16.msra.mxu0 0
      %1904 = vmatprep.subr.bf16.mxu0 0
      %1905 = vmatpush1.bf16.msra.mxu0 0
      %1906 = vmatprep.subr.bf16.mxu0 0
      %1907 = vmatpush1.bf16.msra.mxu0 0
      %1908 = vmatprep.subr.bf16.mxu0 0
      %1909 = vmatpush1.bf16.msra.mxu0 0
      %1910 = vmatprep.subr.bf16.mxu0 0
      %1911 = vmatpush1.bf16.msra.mxu0 0
      %1912 = vmatprep.subr.bf16.mxu0 0
      %1913 = vmatpush1.bf16.msra.mxu0 0
      %1914 = vmatprep.subr.bf16.mxu0 0
      %1915 = vmatpush1.bf16.msra.mxu0 0
      %1916 = vmatprep.subr.bf16.mxu0 0
      %1917 = vmatpush1.bf16.msra.mxu0 0
      %1918 = vmatprep.subr.bf16.mxu0 0
      %1919 = vmatpush1.bf16.msra.mxu0 0
      %1920 = vmatprep.mubr.bf16.mxu0 0
      %1921 = vmatmul.mubr.bf16.gmra.mrb[0].mxu0 %v1856
      %v1922 = vpop.f32.mrb[0].mxu0
      %v1923 = vadd.f32 0.0, %v1922
      %v1924 = vpop.f32.mrb[0].mxu0
      %v1925 = vpop.f32.mrb[0].mxu0
      %v1926 = vadd.f32 0.0, %v1925
      %v1927 = vpop.f32.mrb[0].mxu0
      %1928 = vmatprep.mubr.bf16.mxu0 0
      %1929 = vmatmul.mubr.bf16.gmra.mrb[0].mxu0 %v1859
      %v1930 = vpop.f32.mrb[0].mxu0
      %v1931 = vadd.f32 0.0, %v1930
      %v1932 = vpop.f32.mrb[0].mxu0
      %v1933 = vpop.f32.mrb[0].mxu0
      %v1934 = vadd.f32 0.0, %v1933
      %v1935 = vpop.f32.mrb[0].mxu0
      %1936 = vmatprep.mubr.bf16.mxu0 0
      %1937 = vmatmul.mubr.bf16.gmra.mrb[0].mxu0 %v1862
      %v1938 = vpop.f32.mrb[0].mxu0
      %v1939 = vadd.f32 0.0, %v1938
      %v1940 = vpop.f32.mrb[0].mxu0
      %v1941 = vpop.f32.mrb[0].mxu0
      %v1942 = vadd.f32 0.0, %v1941
      %v1943 = vpop.f32.mrb[0].mxu0
      %1944 = vmatprep.mubr.bf16.mxu0 0
      %1945 = vmatmul.mubr.bf16.gmra.mrb[0].mxu0 %v1865
      %v1946 = vpop.f32.mrb[0].mxu0
      %v1947 = vadd.f32 0.0, %v1946
      %v1948 = vpop.f32.mrb[0].mxu0
      %v1949 = vpop.f32.mrb[0].mxu0
      %v1950 = vadd.f32 0.0, %v1949
      %v1951 = vpop.f32.mrb[0].mxu0
      %1952 = vmatprep.mubr.bf16.mxu0 0
      %1953 = vmatmul.mubr.bf16.gmra.mrb[0].mxu0 %v1868
      %v1954 = vpop.f32.mrb[0].mxu0
      %v1955 = vadd.f32 0.0, %v1954
      %v1956 = vpop.f32.mrb[0].mxu0
      %v1957 = vpop.f32.mrb[0].mxu0
      %v1958 = vadd.f32 0.0, %v1957
      %v1959 = vpop.f32.mrb[0].mxu0
      %1960 = vmatprep.mubr.bf16.mxu0 0
      %1961 = vmatmul.mubr.bf16.gmra.mrb[0].mxu0 %v1871
      %v1962 = vpop.f32.mrb[0].mxu0
      %v1963 = vadd.f32 0.0, %v1962
      %v1964 = vpop.f32.mrb[0].mxu0
      %v1965 = vpop.f32.mrb[0].mxu0
      %v1966 = vadd.f32 0.0, %v1965
      %v1967 = vpop.f32.mrb[0].mxu0
      %1968 = vmatprep.mubr.bf16.mxu0 0
      %1969 = vmatmul.mubr.bf16.gmra.mrb[0].mxu0 %v1874
      %v1970 = vpop.f32.mrb[0].mxu0
      %v1971 = vadd.f32 0.0, %v1970
      %v1972 = vpop.f32.mrb[0].mxu0
      %v1973 = vpop.f32.mrb[0].mxu0
      %v1974 = vadd.f32 0.0, %v1973
      %v1975 = vpop.f32.mrb[0].mxu0
      %1976 = vmatprep.mubr.bf16.mxu0 0
      %1977 = vmatmul.mubr.bf16.gmra.mrb[0].mxu0 %v1877
      %v1978 = vpop.f32.mrb[0].mxu0
      %v1979 = vadd.f32 0.0, %v1978
      %v1980 = vpop.f32.mrb[0].mxu0
      %v1981 = vpop.f32.mrb[0].mxu0
      %v1982 = vadd.f32 0.0, %v1981
      %v1983 = vpop.f32.mrb[0].mxu0
      %1984 = vmatprep.mubr.bf16.mxu0 0
      %1985 = vmatmul.mubr.bf16.gmra.mrb[0].mxu0 %v1880
      %v1986 = vpop.f32.mrb[0].mxu0
      %v1987 = vadd.f32 0.0, %v1986
      %v1988 = vpop.f32.mrb[0].mxu0
      %v1989 = vpop.f32.mrb[0].mxu0
      %v1990 = vadd.f32 0.0, %v1989
      %v1991 = vpop.f32.mrb[0].mxu0
      %1992 = vmatprep.mubr.bf16.mxu0 0
      %1993 = vmatmul.mubr.bf16.gmra.mrb[0].mxu0 %v1883
      %v1994 = vpop.f32.mrb[0].mxu0
      %v1995 = vadd.f32 0.0, %v1994
      %v1996 = vpop.f32.mrb[0].mxu0
      %v1997 = vpop.f32.mrb[0].mxu0
      %v1998 = vadd.f32 0.0, %v1997
      %v1999 = vpop.f32.mrb[0].mxu0
      %2000 = vmatprep.mubr.bf16.mxu0 0
      %2001 = vmatmul.mubr.bf16.gmra.mrb[0].mxu0 %v1886
      %v2002 = vpop.f32.mrb[0].mxu0
      %v2003 = vadd.f32 0.0, %v2002
      %v2004 = vpop.f32.mrb[0].mxu0
      %v2005 = vpop.f32.mrb[0].mxu0
      %v2006 = vadd.f32 0.0, %v2005
      %v2007 = vpop.f32.mrb[0].mxu0
      %2008 = vdwg.mxu0
      %v2009 = vmul.f32 %v1923, %v1817
      %v2010 = vmul.f32 %v1926, %v1818
      %v2011 = vmul.f32 %v1931, %v1819
      %v2012 = vmul.f32 %v1934, %v1820
      %v2013 = vmul.f32 %v1939, %v1821
      %v2014 = vmul.f32 %v1942, %v1822
      %v2015 = vmul.f32 %v1947, %v1823
      %v2016 = vmul.f32 %v1950, %v1824
      %v2017 = vmul.f32 %v1955, %v1825
      %v2018 = vmul.f32 %v1958, %v1826
      %v2019 = vmul.f32 %v1963, %v1827
      %v2020 = vmul.f32 %v1966, %v1828
      %v2021 = vmul.f32 %v1971, %v1829
      %v2022 = vmul.f32 %v1974, %v1830
      %v2023 = vmul.f32 %v1979, %v1831
      %v2024 = vmul.f32 %v1982, %v1832
      %v2025 = vmul.f32 %v1987, %v1833
      %v2026 = vmul.f32 %v1990, %v1834
      %v2027 = vmul.f32 %v1995, %v1835
      %v2028 = vmul.f32 %v1998, %v1836
      %v2029 = vmul.f32 %v2003, %v1837
      %v2030 = vmul.f32 %v2006, %v1838
      %s2031 = sld [smem:[#allocation4]]
      %v2032 = vstv %s2031
      %v2033 = vadd.f32 %v2009, %v2032
      %v2034 = vadd.f32 %v2010, %v2032
      %v2035 = vadd.f32 %v2011, %v2032
      %v2036 = vadd.f32 %v2012, %v2032
      %v2037 = vadd.f32 %v2013, %v2032
      %v2038 = vadd.f32 %v2014, %v2032
      %v2039 = vadd.f32 %v2015, %v2032
      %v2040 = vadd.f32 %v2016, %v2032
      %v2041 = vadd.f32 %v2017, %v2032
      %v2042 = vadd.f32 %v2018, %v2032
      %v2043 = vadd.f32 %v2019, %v2032
      %v2044 = vadd.f32 %v2020, %v2032
      %v2045 = vadd.f32 %v2021, %v2032
      %v2046 = vadd.f32 %v2022, %v2032
      %v2047 = vadd.f32 %v2023, %v2032
      %v2048 = vadd.f32 %v2024, %v2032
      %v2049 = vadd.f32 %v2025, %v2032
      %v2050 = vadd.f32 %v2026, %v2032
      %v2051 = vadd.f32 %v2027, %v2032
      %v2052 = vadd.f32 %v2028, %v2032
      %v2053 = vadd.f32 %v2029, %v2032
      %v2054 = vadd.f32 %v2030, %v2032
      %v2055 = vxor.u32 %v2033, 2147483648
      %v2056 = vxor.u32 %v2034, 2147483648
      %v2057 = vxor.u32 %v2035, 2147483648
      %v2058 = vxor.u32 %v2036, 2147483648
      %v2059 = vxor.u32 %v2037, 2147483648
      %v2060 = vxor.u32 %v2038, 2147483648
      %v2061 = vxor.u32 %v2039, 2147483648
      %v2062 = vxor.u32 %v2040, 2147483648
      %v2063 = vxor.u32 %v2041, 2147483648
      %v2064 = vxor.u32 %v2042, 2147483648
      %v2065 = vxor.u32 %v2043, 2147483648
      %v2066 = vxor.u32 %v2044, 2147483648
      %v2067 = vxor.u32 %v2045, 2147483648
      %v2068 = vxor.u32 %v2046, 2147483648
      %v2069 = vxor.u32 %v2047, 2147483648
      %v2070 = vxor.u32 %v2048, 2147483648
      %v2071 = vxor.u32 %v2049, 2147483648
      %v2072 = vxor.u32 %v2050, 2147483648
      %v2073 = vxor.u32 %v2051, 2147483648
      %v2074 = vxor.u32 %v2052, 2147483648
      %v2075 = vxor.u32 %v2053, 2147483648
      %v2076 = vxor.u32 %v2054, 2147483648
      %v2077 = vmul.f32 %v2055, 1.442695
      %v2078 = vpow.pop %v2077
      %v2079 = vmul.f32 %v2056, 1.442695
      %v2080 = vpow.pop %v2079
      %v2081 = vmul.f32 %v2057, 1.442695
      %v2082 = vpow.pop %v2081
      %v2083 = vmul.f32 %v2058, 1.442695
      %v2084 = vpow.pop %v2083
      %v2085 = vmul.f32 %v2059, 1.442695
      %v2086 = vpow.pop %v2085
      %v2087 = vmul.f32 %v2060, 1.442695
      %v2088 = vpow.pop %v2087
      %v2089 = vmul.f32 %v2061, 1.442695
      %v2090 = vpow.pop %v2089
      %v2091 = vmul.f32 %v2062, 1.442695
      %v2092 = vpow.pop %v2091
      %v2093 = vmul.f32 %v2063, 1.442695
      %v2094 = vpow.pop %v2093
      %v2095 = vmul.f32 %v2064, 1.442695
      %v2096 = vpow.pop %v2095
      %v2097 = vmul.f32 %v2065, 1.442695
      %v2098 = vpow.pop %v2097
      %v2099 = vmul.f32 %v2066, 1.442695
      %v2100 = vpow.pop %v2099
      %v2101 = vmul.f32 %v2067, 1.442695
      %v2102 = vpow.pop %v2101
      %v2103 = vmul.f32 %v2068, 1.442695
      %v2104 = vpow.pop %v2103
      %v2105 = vmul.f32 %v2069, 1.442695
      %v2106 = vpow.pop %v2105
      %v2107 = vmul.f32 %v2070, 1.442695
      %v2108 = vpow.pop %v2107
      %v2109 = vmul.f32 %v2071, 1.442695
      %v2110 = vpow.pop %v2109
      %v2111 = vmul.f32 %v2072, 1.442695
      %v2112 = vpow.pop %v2111
      %v2113 = vmul.f32 %v2073, 1.442695
      %v2114 = vpow.pop %v2113
      %v2115 = vmul.f32 %v2074, 1.442695
      %v2116 = vpow.pop %v2115
      %v2117 = vmul.f32 %v2075, 1.442695
      %v2118 = vpow.pop %v2117
      %v2119 = vmul.f32 %v2076, 1.442695
      %v2120 = vpow.pop %v2119
      %v2121 = vadd.f32 %v2078, 1.0
      %v2122 = vadd.f32 %v2080, 1.0
      %v2123 = vadd.f32 %v2082, 1.0
      %v2124 = vadd.f32 %v2084, 1.0
      %v2125 = vadd.f32 %v2086, 1.0
      %v2126 = vadd.f32 %v2088, 1.0
      %v2127 = vadd.f32 %v2090, 1.0
      %v2128 = vadd.f32 %v2092, 1.0
      %v2129 = vadd.f32 %v2094, 1.0
      %v2130 = vadd.f32 %v2096, 1.0
      %v2131 = vadd.f32 %v2098, 1.0
      %v2132 = vadd.f32 %v2100, 1.0
      %v2133 = vadd.f32 %v2102, 1.0
      %v2134 = vadd.f32 %v2104, 1.0
      %v2135 = vadd.f32 %v2106, 1.0
      %v2136 = vadd.f32 %v2108, 1.0
      %v2137 = vadd.f32 %v2110, 1.0
      %v2138 = vadd.f32 %v2112, 1.0
      %v2139 = vadd.f32 %v2114, 1.0
      %v2140 = vadd.f32 %v2116, 1.0
      %v2141 = vadd.f32 %v2118, 1.0
      %v2142 = vadd.f32 %v2120, 1.0
      %v2143 = vrcp.pop %v2121
      %v2144 = vmul.f32 1.0, %v2143
      %v2145 = vrcp.pop %v2122
      %v2146 = vmul.f32 1.0, %v2145
      %v2147 = vrcp.pop %v2123
      %v2148 = vmul.f32 1.0, %v2147
      %v2149 = vrcp.pop %v2124
      %v2150 = vmul.f32 1.0, %v2149
      %v2151 = vrcp.pop %v2125
      %v2152 = vmul.f32 1.0, %v2151
      %v2153 = vrcp.pop %v2126
      %v2154 = vmul.f32 1.0, %v2153
      %v2155 = vrcp.pop %v2127
      %v2156 = vmul.f32 1.0, %v2155
      %v2157 = vrcp.pop %v2128
      %v2158 = vmul.f32 1.0, %v2157
      %v2159 = vrcp.pop %v2129
      %v2160 = vmul.f32 1.0, %v2159
      %v2161 = vrcp.pop %v2130
      %v2162 = vmul.f32 1.0, %v2161
      %v2163 = vrcp.pop %v2131
      %v2164 = vmul.f32 1.0, %v2163
      %v2165 = vrcp.pop %v2132
      %v2166 = vmul.f32 1.0, %v2165
      %v2167 = vrcp.pop %v2133
      %v2168 = vmul.f32 1.0, %v2167
      %v2169 = vrcp.pop %v2134
      %v2170 = vmul.f32 1.0, %v2169
      %v2171 = vrcp.pop %v2135
      %v2172 = vmul.f32 1.0, %v2171
      %v2173 = vrcp.pop %v2136
      %v2174 = vmul.f32 1.0, %v2173
      %v2175 = vrcp.pop %v2137
      %v2176 = vmul.f32 1.0, %v2175
      %v2177 = vrcp.pop %v2138
      %v2178 = vmul.f32 1.0, %v2177
      %v2179 = vrcp.pop %v2139
      %v2180 = vmul.f32 1.0, %v2179
      %v2181 = vrcp.pop %v2140
      %v2182 = vmul.f32 1.0, %v2181
      %v2183 = vrcp.pop %v2141
      %v2184 = vmul.f32 1.0, %v2183
      %v2185 = vrcp.pop %v2142
      %v2186 = vmul.f32 1.0, %v2185
      %v2187 = vld [vmem:[%s5] sm:$0x1]
      %v2188 = vsub.f32 %v2144, %v1923
      %v2189 = vsub.f32 %v2146, %v1926
      %v2190 = vsub.f32 %v2148, %v1931
      %v2191 = vsub.f32 %v2150, %v1934
      %v2192 = vsub.f32 %v2152, %v1939
      %v2193 = vsub.f32 %v2154, %v1942
      %v2194 = vsub.f32 %v2156, %v1947
      %v2195 = vsub.f32 %v2158, %v1950
      %v2196 = vsub.f32 %v2160, %v1955
      %v2197 = vsub.f32 %v2162, %v1958
      %v2198 = vsub.f32 %v2164, %v1963
      %v2199 = vsub.f32 %v2166, %v1966
      %v2200 = vsub.f32 %v2168, %v1971
      %v2201 = vsub.f32 %v2170, %v1974
      %v2202 = vsub.f32 %v2172, %v1979
      %v2203 = vsub.f32 %v2174, %v1982
      %v2204 = vsub.f32 %v2176, %v1987
      %v2205 = vsub.f32 %v2178, %v1990
      %v2206 = vsub.f32 %v2180, %v1995
      %v2207 = vsub.f32 %v2182, %v1998
      %v2208 = vsub.f32 %v2184, %v2003
      %v2209 = vsub.f32 %v2186, %v2006
      %v2211 = vlaneseq
      %v2212 = vshrl.u32 %v2211, 7
      %v2213 = vsub.s32 0, %v2212
      %v2214 = vrot.slane %v2187, %v2213
      %v2216 = vmul.f32 %v2214, %v2188
      %v2217 = vmul.f32 %v2214, %v2189
      %v2218 = vmul.f32 %v2214, %v2190
      %v2219 = vmul.f32 %v2214, %v2191
      %v2220 = vmul.f32 %v2214, %v2192
      %v2221 = vmul.f32 %v2214, %v2193
      %v2222 = vmul.f32 %v2214, %v2194
      %v2223 = vmul.f32 %v2214, %v2195
      %v2224 = vmul.f32 %v2214, %v2196
      %v2225 = vmul.f32 %v2214, %v2197
      %v2226 = vmul.f32 %v2214, %v2198
      %v2227 = vmul.f32 %v2214, %v2199
      %v2228 = vmul.f32 %v2214, %v2200
      %v2229 = vmul.f32 %v2214, %v2201
      %v2230 = vmul.f32 %v2214, %v2202
      %v2231 = vmul.f32 %v2214, %v2203
      %v2232 = vmul.f32 %v2214, %v2204
      %v2233 = vmul.f32 %v2214, %v2205
      %v2234 = vmul.f32 %v2214, %v2206
      %v2235 = vmul.f32 %v2214, %v2207
      %v2236 = vmul.f32 %v2214, %v2208
      %v2237 = vmul.f32 %v2214, %v2209
      %v2238 = vadd.f32 %v1923, %v2216
      %v2239 = vadd.f32 %v1926, %v2217
      %v2240 = vadd.f32 %v1931, %v2218
      %v2241 = vadd.f32 %v1934, %v2219
      %v2242 = vadd.f32 %v1939, %v2220
      %v2243 = vadd.f32 %v1942, %v2221
      %v2244 = vadd.f32 %v1947, %v2222
      %v2245 = vadd.f32 %v1950, %v2223
      %v2246 = vadd.f32 %v1955, %v2224
      %v2247 = vadd.f32 %v1958, %v2225
      %v2248 = vadd.f32 %v1963, %v2226
      %v2249 = vadd.f32 %v1966, %v2227
      %v2250 = vadd.f32 %v1971, %v2228
      %v2251 = vadd.f32 %v1974, %v2229
      %v2252 = vadd.f32 %v1979, %v2230
      %v2253 = vadd.f32 %v1982, %v2231
      %v2254 = vadd.f32 %v1987, %v2232
      %v2255 = vadd.f32 %v1990, %v2233
      %v2256 = vadd.f32 %v1995, %v2234
      %v2257 = vadd.f32 %v1998, %v2235
      %v2258 = vadd.f32 %v2003, %v2236
      %v2259 = vadd.f32 %v2006, %v2237
      %v2260 = vpack.c.bf16 %v2239, %v2238
      %v2261 = vpack.c.bf16 %v2241, %v2240
      %v2262 = vpack.c.bf16 %v2243, %v2242
      %v2263 = vpack.c.bf16 %v2245, %v2244
      %v2264 = vpack.c.bf16 %v2247, %v2246
      %v2265 = vpack.c.bf16 %v2249, %v2248
      %v2266 = vpack.c.bf16 %v2251, %v2250
      %v2267 = vpack.c.bf16 %v2253, %v2252
      %v2268 = vpack.c.bf16 %v2255, %v2254
      %v2269 = vpack.c.bf16 %v2257, %v2256
      %v2270 = vpack.c.bf16 %v2259, %v2258
      %v2282 = vunpack.c.l.b16 %v2260
      %v2283 = vunpack.c.h.b16 %v2260
      %v2284 = vunpack.c.l.b16 %v2261
      %v2285 = vunpack.c.h.b16 %v2261
      %v2286 = vunpack.c.l.b16 %v2262
      %v2287 = vunpack.c.h.b16 %v2262
      %v2288 = vunpack.c.l.b16 %v2263
      %v2289 = vunpack.c.h.b16 %v2263
      %v2290 = vunpack.c.l.b16 %v2264
      %v2291 = vunpack.c.h.b16 %v2264
      %v2292 = vunpack.c.l.b16 %v2265
      %v2293 = vunpack.c.h.b16 %v2265
      %v2294 = vunpack.c.l.b16 %v2266
      %v2295 = vunpack.c.h.b16 %v2266
      %v2296 = vunpack.c.l.b16 %v2267
      %v2297 = vunpack.c.h.b16 %v2267
      %v2298 = vunpack.c.l.b16 %v2268
      %v2299 = vunpack.c.h.b16 %v2268
      %v2300 = vunpack.c.l.b16 %v2269
      %v2301 = vunpack.c.h.b16 %v2269
      %v2302 = vunpack.c.l.b16 %v2270
      %v2303 = vunpack.c.h.b16 %v2270
      %v2304 = vpack.c.b16 %v2282, %v2282
      %v2305 = vpack.c.b16 %v2283, %v2283
      %v2306 = vpack.c.b16 %v2284, %v2284
      %v2307 = vpack.c.b16 %v2285, %v2285
      %v2308 = vpack.c.b16 %v2286, %v2286
      %v2309 = vpack.c.b16 %v2287, %v2287
      %v2310 = vpack.c.b16 %v2288, %v2288
      %v2311 = vpack.c.b16 %v2289, %v2289
      %v2312 = vpack.c.b16 %v2290, %v2290
      %v2313 = vpack.c.b16 %v2291, %v2291
      %v2314 = vpack.c.b16 %v2292, %v2292
      %v2315 = vpack.c.b16 %v2293, %v2293
      %v2316 = vpack.c.b16 %v2294, %v2294
      %v2317 = vpack.c.b16 %v2295, %v2295
      %v2318 = vpack.c.b16 %v2296, %v2296
      %v2319 = vpack.c.b16 %v2297, %v2297
      %v2320 = vpack.c.b16 %v2298, %v2298
      %v2321 = vpack.c.b16 %v2299, %v2299
      %v2322 = vpack.c.b16 %v2300, %v2300
      %v2323 = vpack.c.b16 %v2301, %v2301
      %v2324 = vpack.c.b16 %v2302, %v2302
      %v2325 = vpack.c.b16 %v2303, %v2303
      %vm2348 = vcmask 60416
      %2349 = vst.msk [vmem:[%s206] sm:$0xf] %vm2348, %v2304
      %2350 = vst.msk [vmem:[%s206 + $0x4] sm:$0xf] %vm2348, %v2305
      %2351 = vst.msk [vmem:[%s206 + $0x8] sm:$0xf] %vm2348, %v2306
      %2352 = vst.msk [vmem:[%s206 + $0xc] sm:$0xf] %vm2348, %v2307
      %2353 = vst.msk [vmem:[%s206 + $0x10] sm:$0xf] %vm2348, %v2308
      %2354 = vst.msk [vmem:[%s206 + $0x14] sm:$0xf] %vm2348, %v2309
      %2355 = vst.msk [vmem:[%s206 + $0x18] sm:$0xf] %vm2348, %v2310
      %2356 = vst.msk [vmem:[%s206 + $0x1c] sm:$0xf] %vm2348, %v2311
      %2357 = vst.msk [vmem:[%s206 + $0x20] sm:$0xf] %vm2348, %v2312
      %2358 = vst.msk [vmem:[%s206 + $0x24] sm:$0xf] %vm2348, %v2313
      %2359 = vst.msk [vmem:[%s206 + $0x28] sm:$0xf] %vm2348, %v2314
      %2360 = vst.msk [vmem:[%s206 + $0x2c] sm:$0xf] %vm2348, %v2315
      %2361 = vst.msk [vmem:[%s206 + $0x30] sm:$0xf] %vm2348, %v2316
      %2362 = vst.msk [vmem:[%s206 + $0x34] sm:$0xf] %vm2348, %v2317
      %2363 = vst.msk [vmem:[%s206 + $0x38] sm:$0xf] %vm2348, %v2318
      %2364 = vst.msk [vmem:[%s206 + $0x3c] sm:$0xf] %vm2348, %v2319
      %2365 = vst.msk [vmem:[%s206 + $0x40] sm:$0xf] %vm2348, %v2320
      %2366 = vst.msk [vmem:[%s206 + $0x44] sm:$0xf] %vm2348, %v2321
      %2367 = vst.msk [vmem:[%s206 + $0x48] sm:$0xf] %vm2348, %v2322
      %2368 = vst.msk [vmem:[%s206 + $0x4c] sm:$0xf] %vm2348, %v2323
      %2369 = vst.msk [vmem:[%s206 + $0x50] sm:$0xf] %vm2348, %v2324
      %2370 = vst.msk [vmem:[%s206 + $0x54] sm:$0xf] %vm2348, %v2325
      %s2371 = smul.u32 22, %s18
      %p2372 = scmp.lt.s32.totalorder %s2371, 43
      %s2373 = scalar_select %p2372, %s2371, 43
      %s2374 = smul.addr %s2373, 4
      %s2375 = scalar_lea.vmem %s6, %s2374
      // Predicated region
      $region78: #{tpu_custom_call.1} parent=39 // pred_check
        %p2376 = pneg %p141
      $region79: #{tpu_custom_call.1} parent=39 // pred_check_branch
        %2378 = sbr.rel (%p2376) target = $region81
      $region80: #{tpu_custom_call.1} parent=39 // pred_region
        %s2379 = smul.u32 22, %s18
      $region81: #{tpu_custom_call.1} parent=39 // pred_fallthru
        _
    $region40: #{tpu_custom_call.1} parent=5 // pred_fallthru
      _
    %p2380 = scmp.le.s32.totalorder 2, %s13
    // Predicated region
    $region82: #{tpu_custom_call.1} parent=5 // pred_check
      %p2381 = pneg %p2380
    $region83: #{tpu_custom_call.1} parent=5 // pred_check_branch
      %2383 = sbr.rel (%p2381) target = $region85
    $region84: #{tpu_custom_call.1} parent=5 // pred_region
      %s2384 = ssub.s32 %s13, 2
      // Predicated region
      $region86: #{tpu_custom_call.1} parent=84 // pred_check
        %p2385 = pneg %p147
      $region87: #{tpu_custom_call.1} parent=84 // pred_check_branch
        %2387 = sbr.rel (%p2385) target = $region89
      $region88: #{tpu_custom_call.1} parent=84 // pred_region
        %s2388 = smul.u32 22, %s19
        %p2389 = scmp.lt.s32.totalorder %s2388, 43
        %s2390 = scalar_select %p2389, %s2388, 43
        %s2391 = smul.addr %s2390, 4
        %s2392 = scalar_lea.vmem %s6, %s2391
      $region89: #{tpu_custom_call.1} parent=84 // pred_fallthru
        _
    $region85: #{tpu_custom_call.1} parent=5 // pred_fallthru
      _
  $region6: #{tpu_custom_call.1} parent=0 // loop_footer
    %s17 = sadd.s32 1, %s13
  $region7: #{tpu_custom_call.1} parent=0 // loop_footer_branch
    %12 = sbr.rel target = $region3
  $region8: #{tpu_custom_call.1} parent=0 // loop_exit
    _
  %2393 = vsyncmov [#allocation3]
  %s2394 = vpop.sfrf %2393
  %p2395 = scmp.eq.s32.totalorder %s2394, 0
  %p2396 = pneg %p2395
  %2398 = shalt.err (%p2396)

</llo_original>
